<compile_context>
chip_gen: v7x
topology: tpu7x:2x2x1
jax: 0.10.0
libtpu: 0.0.40
codegen_flags: <defaults>
</compile_context>

<pallas_src>
import functools

import jax
import jax.numpy as jnp
from jax.experimental import pallas as pl
from jax.experimental.pallas import tpu as pltpu

LANE = 128


def _round_up(x, m):
    return ((x + m - 1) // m) * m


# ---------------------------------------------------------------------------
# Kernel bodies
# ---------------------------------------------------------------------------
def _conv1_dual_kernel(x_ref, w_ref, b_ref, o_ref, kbuf, *, cin, m_pad, nb, taps):
    """3x3 stride-1 conv + bias + ReLU for one backbone stream per grid step.

    The whole batch is folded into the lane axis and the 9 taps are stacked
    along the contraction axis in a VMEM scratch, so the conv collapses into a
    SINGLE MXU dot:  (Cout, 9*cin) @ (9*cin, nb*m_pad).
    """
    for b in range(nb):
        xb = x_ref[0, b]                                       # (cin, L) bf16
        for t, (cs, off) in enumerate(taps):
            kbuf[t * cin:(t + 1) * cin, b * m_pad:(b + 1) * m_pad] = (
                xb[cs:cs + cin, off:off + m_pad])
    acc = jnp.dot(w_ref[0], kbuf[...], preferred_element_type=jnp.float32)
    o_ref[0] = jnp.maximum(acc + b_ref[0], 0.0).astype(o_ref.dtype)


def _conv2_merged_kernel(x_ref, w_ref, b_ref, o_ref, kbuf, *, cin, cdep, m_pad,
                         taps):
    """Stride-2 3x3 conv for BOTH backbones in one call (grid = (B, 2)).

    stream 0 (depth): conv + bias + ReLU; the result is parked in the last
      `cdep` rows of the K-scratch (VMEM-resident, never written to HBM).
    stream 1 (rgb):   conv + fused 1x1 depth injection in the SAME MXU dot
      (K = 9*cin + cdep), bias + ReLU, stored to the output.
    """
    s = pl.program_id(1)
    k9 = 9 * cin
    x = x_ref[0, 0]                                            # (4*cin, L) bf16
    w = w_ref[0]                                               # (Cout, K) bf16
    for t, (cs, off) in enumerate(taps):
        kbuf[t * cin:(t + 1) * cin, :] = x[cs:cs + cin, off:off + m_pad]

    @pl.when(s == 0)
    def _():
        acc = jnp.dot(w[:, :k9], kbuf[:k9, :],
                      preferred_element_type=jnp.float32)
        kbuf[k9:k9 + cdep, :] = jnp.maximum(acc + b_ref[0], 0.0).astype(kbuf.dtype)

    @pl.when(s == 1)
    def _():
        acc = jnp.dot(w, kbuf[...], preferred_element_type=jnp.float32)
        o_ref[0] = jnp.maximum(acc + b_ref[0], 0.0).astype(o_ref.dtype)


# ---------------------------------------------------------------------------
# Wrapper-side prep (XLA glue): padding / flattening / tap tables / weights.
# ---------------------------------------------------------------------------
def _wcat(w, cin_pad=None):
    """Conv weight (Cout, Cin, 3, 3) -> (Cout, 9*Cin'), column = (kh*3+kw)*Cin'+c."""
    cout, cin = w.shape[0], w.shape[1]
    if cin_pad is not None and cin_pad > cin:
        w = jnp.pad(w, ((0, 0), (0, cin_pad - cin), (0, 0), (0, 0)))
        cin = cin_pad
    return jnp.transpose(w, (0, 2, 3, 1)).reshape(cout, 9 * cin)


def _prep_stride1(x, cpad=8):
    """NCHW (B,C,H,W) -> bf16 (B, cpad, L) padded flat slab + tap table (s=1)."""
    B, C, H, W = x.shape
    Hp, Wp = H + 2, W + 2
    xp = jnp.pad(x, ((0, 0), (0, cpad - C), (1, 1), (1, 1)))
    m_raw = H * Wp                       # includes 2 garbage cols per row
    m_pad = _round_up(m_raw, LANE)
    L = _round_up(m_pad + 2 * Wp + 2, LANE)
    flat = xp.reshape(B, cpad, Hp * Wp)
    flat = jnp.pad(flat, ((0, 0), (0, 0), (0, L - Hp * Wp)))
    taps = tuple((0, kh * Wp + kw) for kh in range(3) for kw in range(3))
    return flat.astype(jnp.bfloat16), taps, m_raw, m_pad, Wp


def _prep_stride2(x):
    """NCHW (B,C,H,W) -> bf16 (B, 4C, L) parity-plane slab + tap table (s=2)."""
    B, C, H, W = x.shape
    H2, W2 = H // 2, W // 2
    Hq, Wq = H2 + 1, W2 + 1
    xp = jnp.pad(x, ((0, 0), (0, 0), (1, 1), (1, 1)))
    # parity plane p = pr*2+pc holds xp[2i+pr, 2j+pc]; stride-2 3x3 conv then
    # becomes contiguous-offset taps over the planes (only the H/2 x W/2 outputs).
    planes = [xp[:, :, pr::2, pc::2] for pr in range(2) for pc in range(2)]
    xq = jnp.concatenate(planes, axis=1)            # (B, 4C, Hq, Wq)
    m_raw = H2 * Wq                                  # 1 garbage col per row
    m_pad = _round_up(m_raw, LANE)
    L = _round_up(m_pad + Wq + 1, LANE)
    flat = xq.reshape(B, 4 * C, Hq * Wq)
    flat = jnp.pad(flat, ((0, 0), (0, 0), (0, L - Hq * Wq)))
    taps = tuple((((kh % 2) * 2 + (kw % 2)) * C, (kh // 2) * Wq + (kw // 2))
                 for kh in range(3) for kw in range(3))
    return flat.astype(jnp.bfloat16), taps, m_raw, m_pad, Wq


def _unfold_conv1(out_s, nb, c, H, W, Wp, m_pad, m_raw):
    """(c, nb*m_pad) batch-folded channel-major -> NCHW (nb, c, H, W)."""
    y = out_s.reshape(c, nb, m_pad)[:, :, :m_raw]
    y = y.reshape(c, nb, H, Wp)[:, :, :, :W]
    return jnp.transpose(y, (1, 0, 2, 3))


# ---------------------------------------------------------------------------
# pallas_call wrappers
# ---------------------------------------------------------------------------
def _conv1_dual_call(flat, wcat, bias, taps, *, cin, m_pad, nb):
    # flat: (S, B, cin, L) bf16; wcat: (S, Cout, 9*cin) bf16; bias: (S, Cout, 1) f32
    S, B, cx, L = flat.shape
    cout, kdim = wcat.shape[1], wcat.shape[2]
    m_tot = nb * m_pad
    kern = functools.partial(_conv1_dual_kernel, cin=cin, m_pad=m_pad, nb=nb,
                             taps=taps)
    flops = 2 * kdim * cout * m_tot * S
    byts = int(flat.size * 2 + wcat.size * 2 + bias.size * 4 + S * cout * m_tot * 2)
    return pl.pallas_call(
        kern,
        out_shape=jax.ShapeDtypeStruct((S, cout, m_tot), jnp.bfloat16),
        grid=(S,),
        in_specs=[
            pl.BlockSpec((1, B, cx, L), lambda s: (s, 0, 0, 0)),
            pl.BlockSpec((1, cout, kdim), lambda s: (s, 0, 0)),
            pl.BlockSpec((1, cout, 1), lambda s: (s, 0, 0)),
        ],
        out_specs=pl.BlockSpec((1, cout, m_tot), lambda s: (s, 0, 0)),
        scratch_shapes=[pltpu.VMEM((kdim, m_tot), jnp.bfloat16)],
        compiler_params=pltpu.CompilerParams(
            dimension_semantics=("parallel",),
            vmem_limit_bytes=32 * 1024 * 1024),
        cost_estimate=pl.CostEstimate(flops=int(flops), transcendentals=0,
                                      bytes_accessed=byts),
    )(flat, wcat, bias)


def _conv2_merged_call(flat, wcat, bias, taps, *, cin, cdep, m_pad):
    # flat: (2, B, 4*cin, L) bf16 (stream 0 = depth f1, stream 1 = rgb f1)
    # wcat: (2, Cout, 9*cin + cdep) bf16; bias: (2, Cout, 1) f32
    S, B, cx, L = flat.shape
    cout, kfull = wcat.shape[1], wcat.shape[2]
    kern = functools.partial(_conv2_merged_kernel, cin=cin, cdep=cdep,
                             m_pad=m_pad, taps=taps)
    flops = 2 * (9 * cin + kfull) * cout * m_pad * B
    byts = int(flat.size * 2 + wcat.size * 2 + bias.size * 4 + B * cout * m_pad * 4)
    return pl.pallas_call(
        kern,
        out_shape=jax.ShapeDtypeStruct((B, cout, m_pad), jnp.float32),
        grid=(B, S),
        in_specs=[
            pl.BlockSpec((1, 1, cx, L), lambda b, s: (s, b, 0, 0)),
            pl.BlockSpec((1, cout, kfull), lambda b, s: (s, 0, 0)),
            pl.BlockSpec((1, cout, 1), lambda b, s: (s, 0, 0)),
        ],
        out_specs=pl.BlockSpec((1, cout, m_pad), lambda b, s: (b, 0, 0)),
        scratch_shapes=[pltpu.VMEM((kfull, m_pad), jnp.bfloat16)],
        compiler_params=pltpu.CompilerParams(
            dimension_semantics=("parallel", "arbitrary"),
            vmem_limit_bytes=32 * 1024 * 1024),
        cost_estimate=pl.CostEstimate(flops=int(flops), transcendentals=0,
                                      bytes_accessed=byts),
    )(flat, wcat, bias)


# ---------------------------------------------------------------------------
# Synthetic backbones + DualBackboneInj forward
# ---------------------------------------------------------------------------
def _init_params(key, c1=8, c2=16):
    ks = jax.random.split(key, 10)
    return {
        # depth backbone
        "d_w1": 0.1 * jax.random.normal(ks[0], (c1, 3, 3, 3), jnp.float32),
        "d_b1": 0.01 * jax.random.normal(ks[1], (c1,), jnp.float32),
        "d_w2": 0.1 * jax.random.normal(ks[2], (c2, c1, 3, 3), jnp.float32),
        "d_b2": 0.01 * jax.random.normal(ks[3], (c2,), jnp.float32),
        # rgb backbone
        "r_w1": 0.1 * jax.random.normal(ks[4], (c1, 3, 3, 3), jnp.float32),
        "r_b1": 0.01 * jax.random.normal(ks[5], (c1,), jnp.float32),
        "r_w2": 0.1 * jax.random.normal(ks[6], (c2, c1, 3, 3), jnp.float32),
        "r_b2": 0.01 * jax.random.normal(ks[7], (c2,), jnp.float32),
        # 1x1 depth->rgb injection projection
        "proj_w": 0.1 * jax.random.normal(ks[8], (c2, c2), jnp.float32),
        "proj_b": 0.01 * jax.random.normal(ks[9], (c2,), jnp.float32),
    }


def _backbone_rgb_wo_depth(params, rgb):
    # rgb backbone without injection (torch path: wo_depth=True and depth None).
    rgb = rgb.astype(jnp.float32)
    B, _, H, W = rgb.shape
    c1, c2 = params["r_w1"].shape[0], params["r_w2"].shape[0]
    fr, taps1, m1_raw, m1_pad, Wp = _prep_stride1(rgb)
    w1 = _wcat(params["r_w1"], cin_pad=8)[None].astype(jnp.bfloat16)
    b1 = params["r_b1"].reshape(1, c1, 1)
    out1 = _conv1_dual_call(fr[None], w1, b1, taps1, cin=8, m_pad=m1_pad, nb=B)
    f1 = _unfold_conv1(out1[0], B, c1, H, W, Wp, m1_pad, m1_raw)
    frr, taps2, m2_raw, m2_pad, Wq = _prep_stride2(f1)
    # zero injection columns; stream 0 is a dummy pass (this path is not
    # exercised by the demo -- kept only for module-semantics completeness).
    wz = jnp.concatenate([_wcat(params["r_w2"]),
                          jnp.zeros((c2, c2), jnp.float32)], axis=1)
    w2 = jnp.stack([wz, wz], axis=0).astype(jnp.bfloat16)
    b2 = jnp.stack([params["r_b2"].reshape(c2, 1)] * 2, axis=0)
    f2_flat = _conv2_merged_call(jnp.stack([frr, frr], axis=0), w2, b2, taps2,
                                 cin=c1, cdep=c2, m_pad=m2_pad)
    f2 = f2_flat[:, :, :m2_raw].reshape(B, c2, H // 2, Wq)[:, :, :, :W // 2]
    return (f1.astype(jnp.float32), f2)


def dual_backbone_inj_forward(params, rgb, depth, mode=None, **kwargs):
    """Mirrors DualBackboneInj.forward. rgb: (B,3,H,W), depth: (B,1,H,W)."""
    wo_depth = kwargs.get("wo_depth", False) and depth is None   # torch gate
    if wo_depth:
        return _backbone_rgb_wo_depth(params, rgb)

    # depth.squeeze(); if 2-D re-add batch; stack x3 on channel; .float()
    d = jnp.squeeze(depth)
    if d.ndim == 2:
        d = d[None]
    d = jnp.stack([d] * 3, axis=1).astype(jnp.float32)            # (B,3,H,W)
    rgb = rgb.astype(jnp.float32)

    B, _, H, W = rgb.shape
    c1 = params["d_w1"].shape[0]
    c2 = params["d_w2"].shape[0]

    # --- conv1 of BOTH backbones: ONE pallas_call, grid=(2,), batch in lanes --
    fd, taps1, m1_raw, m1_pad, Wp = _prep_stride1(d)
    fr, _, _, _, _ = _prep_stride1(rgb)
    flat1 = jnp.stack([fd, fr], axis=0)                           # (2,B,8,L1)
    w1 = jnp.stack([_wcat(params["d_w1"], cin_pad=8),
                    _wcat(params["r_w1"], cin_pad=8)], axis=0).astype(jnp.bfloat16)
    b1 = jnp.stack([params["d_b1"].reshape(c1, 1),
                    params["r_b1"].reshape(c1, 1)], axis=0)
    out1 = _conv1_dual_call(flat1, w1, b1, taps1, cin=8, m_pad=m1_pad, nb=B)
    f1_depth = _unfold_conv1(out1[0], B, c1, H, W, Wp, m1_pad, m1_raw)  # bf16
    f1_rgb = _unfold_conv1(out1[1], B, c1, H, W, Wp, m1_pad, m1_raw)    # bf16

    # --- conv2 of BOTH backbones merged: depth first ('arbitrary' axis), the
    # depth feature stays VMEM-resident and is injected into the rgb dot. -----
    # TODO(synk): store conv1 output directly in this parity-plane layout to
    # drop the crop->pad->split->concat re-layout below.
    fdd, taps2, m2_raw, m2_pad, Wq = _prep_stride2(f1_depth)
    frr, _, _, _, _ = _prep_stride2(f1_rgb)
    flat2 = jnp.stack([fdd, frr], axis=0)                         # (2,B,4*c1,L2)
    w_d2 = jnp.concatenate([_wcat(params["d_w2"]),
                            jnp.zeros((c2, c2), jnp.float32)], axis=1)
    w_r2 = jnp.concatenate([_wcat(params["r_w2"]), params["proj_w"]], axis=1)
    w2 = jnp.stack([w_d2, w_r2], axis=0).astype(jnp.bfloat16)     # (2,c2,88)
    b2 = jnp.stack([params["d_b2"].reshape(c2, 1),
                    (params["r_b2"] + params["proj_b"]).reshape(c2, 1)], axis=0)
    f2_flat = _conv2_merged_call(flat2, w2, b2, taps2,
                                 cin=c1, cdep=c2, m_pad=m2_pad)
    f2_rgb = f2_flat[:, :, :m2_raw].reshape(B, c2, H // 2, Wq)[:, :, :, :W // 2]

    return (f1_rgb.astype(jnp.float32), f2_rgb)


# ---------------------------------------------------------------------------
# Pure-JAX reference (for correctness check only)
# ---------------------------------------------------------------------------
def _conv2d_ref(x, w, b, stride):
    y = jax.lax.conv_general_dilated(
        x, w, window_strides=(stride, stride), padding=((1, 1), (1, 1)),
        dimension_numbers=("NCHW", "OIHW", "NCHW"),
        precision=jax.lax.Precision.HIGHEST)
    return y + b.reshape(1, -1, 1, 1)


def _forward_reference(params, rgb, depth):
    d = jnp.squeeze(depth)
    if d.ndim == 2:
        d = d[None]
    d = jnp.stack([d] * 3, axis=1).astype(jnp.float32)
    rgb = rgb.astype(jnp.float32)
    f1_d = jax.nn.relu(_conv2d_ref(d, params["d_w1"], params["d_b1"], 1))
    f2_d = jax.nn.relu(_conv2d_ref(f1_d, params["d_w2"], params["d_b2"], 2))
    f1_r = jax.nn.relu(_conv2d_ref(rgb, params["r_w1"], params["r_b1"], 1))
    inj = (jnp.einsum("oc,bchw->bohw", params["proj_w"], f2_d,
                      precision=jax.lax.Precision.HIGHEST)
           + params["proj_b"].reshape(1, -1, 1, 1))
    f2_r = jax.nn.relu(_conv2d_ref(f1_r, params["r_w2"], params["r_b2"], 2) + inj)
    return (f1_r, f2_r)


# ---------------------------------------------------------------------------
if __name__ == "__main__":
    key = jax.random.PRNGKey(0)
    k_rgb, k_dep, k_par = jax.random.split(key, 3)

    B, H, W = 2, 16, 16
    rgb = jax.random.normal(k_rgb, (B, 3, H, W), jnp.float32)     # NCHW
    depth = jax.random.normal(k_dep, (B, 1, H, W), jnp.float32)   # NCHW

    params = _init_params(k_par, c1=8, c2=16)

    fwd = jax.jit(dual_backbone_inj_forward)
    feats = jax.block_until_ready(fwd(params, rgb, depth))

    assert feats[0].shape == (B, 8, H, W)
    assert feats[1].shape == (B, 16, H // 2, W // 2)

    ref = _forward_reference(params, rgb, depth)
    for got, want in zip(feats, ref):
        assert bool(jnp.isfinite(got).all())
        err = float(jnp.max(jnp.abs(got.astype(jnp.float32) - want)))
        assert err < 5e-2, f"max abs error vs reference: {err}"

    print("KERNEL_OK")
</pallas_src>

<mosaic_0001>
module attributes {stable_mosaic.version = 11 : i64} {
  func.func @_conv1_dual_kernel(%arg0: i32, %arg1: memref<1x2x8x512xbf16, #tpu.memory_space<vmem>>, %arg2: memref<1x8x72xbf16, #tpu.memory_space<vmem>>, %arg3: memref<1x8x1xf32, #tpu.memory_space<vmem>>, %arg4: memref<1x8x768xbf16, #tpu.memory_space<vmem>>, %arg5: memref<72x768xbf16, #tpu.memory_space<vmem>>) attributes {dimension_semantics = [#tpu.dimension_semantics<parallel>], iteration_bounds = array<i64: 2>, scalar_prefetch = 0 : i64, scratch_operands = 1 : i64, tpu.core_type = #tpu.core_type<tc>, window_params = [{transform_indices = @transform_0, window_bounds = array<i64: 1, 2, 8, 512>}, {transform_indices = @transform_1, window_bounds = array<i64: 1, 8, 72>}, {transform_indices = @transform_2, window_bounds = array<i64: 1, 8, 1>}, {transform_indices = @transform_3, window_bounds = array<i64: 1, 8, 768>}]} {
    %c0 = arith.constant 0 : index
    %c0_0 = arith.constant 0 : index
    %c0_1 = arith.constant 0 : index
    %c0_2 = arith.constant 0 : index
    %0 = vector.load %arg1[%c0, %c0_0, %c0_1, %c0_2] : memref<1x2x8x512xbf16, #tpu.memory_space<vmem>>, vector<1x1x8x512xbf16>
    %1 = vector.shape_cast %0 : vector<1x1x8x512xbf16> to vector<8x512xbf16>
    %2 = vector.extract_strided_slice %1 {offsets = [0, 0], sizes = [8, 384], strides = [1, 1]} : vector<8x512xbf16> to vector<8x384xbf16>
    %c0_3 = arith.constant 0 : index
    %c0_4 = arith.constant 0 : index
    %3 = vector.load %arg5[%c0_3, %c0_4] : memref<72x768xbf16, #tpu.memory_space<vmem>>, vector<8x384xbf16>
    tpu.vector_store %arg5[%c0_3, %c0_4], %2 {strides = array<i32>} : memref<72x768xbf16, #tpu.memory_space<vmem>>, vector<8x384xbf16>,
    %4 = vector.extract_strided_slice %1 {offsets = [0, 1], sizes = [8, 384], strides = [1, 1]} : vector<8x512xbf16> to vector<8x384xbf16>
    %c8 = arith.constant 8 : index
    %c0_5 = arith.constant 0 : index
    %5 = vector.load %arg5[%c8, %c0_5] : memref<72x768xbf16, #tpu.memory_space<vmem>>, vector<8x384xbf16>
    tpu.vector_store %arg5[%c8, %c0_5], %4 {strides = array<i32>} : memref<72x768xbf16, #tpu.memory_space<vmem>>, vector<8x384xbf16>,
    %6 = vector.extract_strided_slice %1 {offsets = [0, 2], sizes = [8, 384], strides = [1, 1]} : vector<8x512xbf16> to vector<8x384xbf16>
    %c16 = arith.constant 16 : index
    %c0_6 = arith.constant 0 : index
    %7 = vector.load %arg5[%c16, %c0_6] : memref<72x768xbf16, #tpu.memory_space<vmem>>, vector<8x384xbf16>
    tpu.vector_store %arg5[%c16, %c0_6], %6 {strides = array<i32>} : memref<72x768xbf16, #tpu.memory_space<vmem>>, vector<8x384xbf16>,
    %8 = vector.extract_strided_slice %1 {offsets = [0, 18], sizes = [8, 384], strides = [1, 1]} : vector<8x512xbf16> to vector<8x384xbf16>
    %c24 = arith.constant 24 : index
    %c0_7 = arith.constant 0 : index
    %9 = vector.load %arg5[%c24, %c0_7] : memref<72x768xbf16, #tpu.memory_space<vmem>>, vector<8x384xbf16>
    tpu.vector_store %arg5[%c24, %c0_7], %8 {strides = array<i32>} : memref<72x768xbf16, #tpu.memory_space<vmem>>, vector<8x384xbf16>,
    %10 = vector.extract_strided_slice %1 {offsets = [0, 19], sizes = [8, 384], strides = [1, 1]} : vector<8x512xbf16> to vector<8x384xbf16>
    %c32 = arith.constant 32 : index
    %c0_8 = arith.constant 0 : index
    %11 = vector.load %arg5[%c32, %c0_8] : memref<72x768xbf16, #tpu.memory_space<vmem>>, vector<8x384xbf16>
    tpu.vector_store %arg5[%c32, %c0_8], %10 {strides = array<i32>} : memref<72x768xbf16, #tpu.memory_space<vmem>>, vector<8x384xbf16>,
    %12 = vector.extract_strided_slice %1 {offsets = [0, 20], sizes = [8, 384], strides = [1, 1]} : vector<8x512xbf16> to vector<8x384xbf16>
    %c40 = arith.constant 40 : index
    %c0_9 = arith.constant 0 : index
    %13 = vector.load %arg5[%c40, %c0_9] : memref<72x768xbf16, #tpu.memory_space<vmem>>, vector<8x384xbf16>
    tpu.vector_store %arg5[%c40, %c0_9], %12 {strides = array<i32>} : memref<72x768xbf16, #tpu.memory_space<vmem>>, vector<8x384xbf16>,
    %14 = vector.extract_strided_slice %1 {offsets = [0, 36], sizes = [8, 384], strides = [1, 1]} : vector<8x512xbf16> to vector<8x384xbf16>
    %c48 = arith.constant 48 : index
    %c0_10 = arith.constant 0 : index
    %15 = vector.load %arg5[%c48, %c0_10] : memref<72x768xbf16, #tpu.memory_space<vmem>>, vector<8x384xbf16>
    tpu.vector_store %arg5[%c48, %c0_10], %14 {strides = array<i32>} : memref<72x768xbf16, #tpu.memory_space<vmem>>, vector<8x384xbf16>,
    %16 = vector.extract_strided_slice %1 {offsets = [0, 37], sizes = [8, 384], strides = [1, 1]} : vector<8x512xbf16> to vector<8x384xbf16>
    %c56 = arith.constant 56 : index
    %c0_11 = arith.constant 0 : index
    %17 = vector.load %arg5[%c56, %c0_11] : memref<72x768xbf16, #tpu.memory_space<vmem>>, vector<8x384xbf16>
    tpu.vector_store %arg5[%c56, %c0_11], %16 {strides = array<i32>} : memref<72x768xbf16, #tpu.memory_space<vmem>>, vector<8x384xbf16>,
    %18 = vector.extract_strided_slice %1 {offsets = [0, 38], sizes = [8, 384], strides = [1, 1]} : vector<8x512xbf16> to vector<8x384xbf16>
    %c64 = arith.constant 64 : index
    %c0_12 = arith.constant 0 : index
    %19 = vector.load %arg5[%c64, %c0_12] : memref<72x768xbf16, #tpu.memory_space<vmem>>, vector<8x384xbf16>
    tpu.vector_store %arg5[%c64, %c0_12], %18 {strides = array<i32>} : memref<72x768xbf16, #tpu.memory_space<vmem>>, vector<8x384xbf16>,
    %c0_13 = arith.constant 0 : index
    %c1 = arith.constant 1 : index
    %c0_14 = arith.constant 0 : index
    %c0_15 = arith.constant 0 : index
    %20 = vector.load %arg1[%c0_13, %c1, %c0_14, %c0_15] : memref<1x2x8x512xbf16, #tpu.memory_space<vmem>>, vector<1x1x8x512xbf16>
    %21 = vector.shape_cast %20 : vector<1x1x8x512xbf16> to vector<8x512xbf16>
    %22 = vector.extract_strided_slice %21 {offsets = [0, 0], sizes = [8, 384], strides = [1, 1]} : vector<8x512xbf16> to vector<8x384xbf16>
    %c0_16 = arith.constant 0 : index
    %c384 = arith.constant 384 : index
    %23 = vector.load %arg5[%c0_16, %c384] : memref<72x768xbf16, #tpu.memory_space<vmem>>, vector<8x384xbf16>
    tpu.vector_store %arg5[%c0_16, %c384], %22 {strides = array<i32>} : memref<72x768xbf16, #tpu.memory_space<vmem>>, vector<8x384xbf16>,
    %24 = vector.extract_strided_slice %21 {offsets = [0, 1], sizes = [8, 384], strides = [1, 1]} : vector<8x512xbf16> to vector<8x384xbf16>
    %c8_17 = arith.constant 8 : index
    %c384_18 = arith.constant 384 : index
    %25 = vector.load %arg5[%c8_17, %c384_18] : memref<72x768xbf16, #tpu.memory_space<vmem>>, vector<8x384xbf16>
    tpu.vector_store %arg5[%c8_17, %c384_18], %24 {strides = array<i32>} : memref<72x768xbf16, #tpu.memory_space<vmem>>, vector<8x384xbf16>,
    %26 = vector.extract_strided_slice %21 {offsets = [0, 2], sizes = [8, 384], strides = [1, 1]} : vector<8x512xbf16> to vector<8x384xbf16>
    %c16_19 = arith.constant 16 : index
    %c384_20 = arith.constant 384 : index
    %27 = vector.load %arg5[%c16_19, %c384_20] : memref<72x768xbf16, #tpu.memory_space<vmem>>, vector<8x384xbf16>
    tpu.vector_store %arg5[%c16_19, %c384_20], %26 {strides = array<i32>} : memref<72x768xbf16, #tpu.memory_space<vmem>>, vector<8x384xbf16>,
    %28 = vector.extract_strided_slice %21 {offsets = [0, 18], sizes = [8, 384], strides = [1, 1]} : vector<8x512xbf16> to vector<8x384xbf16>
    %c24_21 = arith.constant 24 : index
    %c384_22 = arith.constant 384 : index
    %29 = vector.load %arg5[%c24_21, %c384_22] : memref<72x768xbf16, #tpu.memory_space<vmem>>, vector<8x384xbf16>
    tpu.vector_store %arg5[%c24_21, %c384_22], %28 {strides = array<i32>} : memref<72x768xbf16, #tpu.memory_space<vmem>>, vector<8x384xbf16>,
    %30 = vector.extract_strided_slice %21 {offsets = [0, 19], sizes = [8, 384], strides = [1, 1]} : vector<8x512xbf16> to vector<8x384xbf16>
    %c32_23 = arith.constant 32 : index
    %c384_24 = arith.constant 384 : index
    %31 = vector.load %arg5[%c32_23, %c384_24] : memref<72x768xbf16, #tpu.memory_space<vmem>>, vector<8x384xbf16>
    tpu.vector_store %arg5[%c32_23, %c384_24], %30 {strides = array<i32>} : memref<72x768xbf16, #tpu.memory_space<vmem>>, vector<8x384xbf16>,
    %32 = vector.extract_strided_slice %21 {offsets = [0, 20], sizes = [8, 384], strides = [1, 1]} : vector<8x512xbf16> to vector<8x384xbf16>
    %c40_25 = arith.constant 40 : index
    %c384_26 = arith.constant 384 : index
    %33 = vector.load %arg5[%c40_25, %c384_26] : memref<72x768xbf16, #tpu.memory_space<vmem>>, vector<8x384xbf16>
    tpu.vector_store %arg5[%c40_25, %c384_26], %32 {strides = array<i32>} : memref<72x768xbf16, #tpu.memory_space<vmem>>, vector<8x384xbf16>,
    %34 = vector.extract_strided_slice %21 {offsets = [0, 36], sizes = [8, 384], strides = [1, 1]} : vector<8x512xbf16> to vector<8x384xbf16>
    %c48_27 = arith.constant 48 : index
    %c384_28 = arith.constant 384 : index
    %35 = vector.load %arg5[%c48_27, %c384_28] : memref<72x768xbf16, #tpu.memory_space<vmem>>, vector<8x384xbf16>
    tpu.vector_store %arg5[%c48_27, %c384_28], %34 {strides = array<i32>} : memref<72x768xbf16, #tpu.memory_space<vmem>>, vector<8x384xbf16>,
    %36 = vector.extract_strided_slice %21 {offsets = [0, 37], sizes = [8, 384], strides = [1, 1]} : vector<8x512xbf16> to vector<8x384xbf16>
    %c56_29 = arith.constant 56 : index
    %c384_30 = arith.constant 384 : index
    %37 = vector.load %arg5[%c56_29, %c384_30] : memref<72x768xbf16, #tpu.memory_space<vmem>>, vector<8x384xbf16>
    tpu.vector_store %arg5[%c56_29, %c384_30], %36 {strides = array<i32>} : memref<72x768xbf16, #tpu.memory_space<vmem>>, vector<8x384xbf16>,
    %38 = vector.extract_strided_slice %21 {offsets = [0, 38], sizes = [8, 384], strides = [1, 1]} : vector<8x512xbf16> to vector<8x384xbf16>
    %c64_31 = arith.constant 64 : index
    %c384_32 = arith.constant 384 : index
    %39 = vector.load %arg5[%c64_31, %c384_32] : memref<72x768xbf16, #tpu.memory_space<vmem>>, vector<8x384xbf16>
    tpu.vector_store %arg5[%c64_31, %c384_32], %38 {strides = array<i32>} : memref<72x768xbf16, #tpu.memory_space<vmem>>, vector<8x384xbf16>,
    %c0_33 = arith.constant 0 : index
    %c0_34 = arith.constant 0 : index
    %c0_35 = arith.constant 0 : index
    %40 = vector.load %arg2[%c0_33, %c0_34, %c0_35] : memref<1x8x72xbf16, #tpu.memory_space<vmem>>, vector<1x8x72xbf16>
    %41 = vector.shape_cast %40 : vector<1x8x72xbf16> to vector<8x72xbf16>
    %c0_36 = arith.constant 0 : index
    %c0_37 = arith.constant 0 : index
    %42 = vector.load %arg5[%c0_36, %c0_37] : memref<72x768xbf16, #tpu.memory_space<vmem>>, vector<72x768xbf16>
    %cst = arith.constant dense<0.000000e+00> : vector<8x768xf32>
    %43 = tpu.matmul %41, %42, %cst {dimension_numbers = #tpu.dot_dimension_numbers<[1], [0], [0], [1], [0, 0, 1, 1], [], []>} : vector<8x72xbf16>, vector<72x768xbf16>, vector<8x768xf32> -> vector<8x768xf32>
    %c0_38 = arith.constant 0 : index
    %c0_39 = arith.constant 0 : index
    %c0_40 = arith.constant 0 : index
    %44 = vector.load %arg3[%c0_38, %c0_39, %c0_40] : memref<1x8x1xf32, #tpu.memory_space<vmem>>, vector<1x8x1xf32>
    %45 = vector.shape_cast %44 : vector<1x8x1xf32> to vector<8x1xf32>
    %46 = vector.broadcast %45 : vector<8x1xf32> to vector<8x768xf32>
    %47 = arith.addf %43, %46 : vector<8x768xf32>
    %cst_41 = arith.constant 0.000000e+00 : f32
    %48 = vector.broadcast %cst_41 : f32 to vector<8x768xf32>
    %49 = arith.maximumf %47, %48 : vector<8x768xf32>
    %50 = arith.truncf %49 : vector<8x768xf32> to vector<8x768xbf16>
    %c0_42 = arith.constant 0 : index
    %c0_43 = arith.constant 0 : index
    %c0_44 = arith.constant 0 : index
    %51 = vector.load %arg4[%c0_42, %c0_43, %c0_44] : memref<1x8x768xbf16, #tpu.memory_space<vmem>>, vector<1x8x768xbf16>
    %52 = vector.shape_cast %51 : vector<1x8x768xbf16> to vector<8x768xbf16>
    %53 = vector.shape_cast %50 : vector<8x768xbf16> to vector<1x8x768xbf16>
    tpu.vector_store %arg4[%c0_42, %c0_43, %c0_44], %53 {strides = array<i32>} : memref<1x8x768xbf16, #tpu.memory_space<vmem>>, vector<1x8x768xbf16>,
    return
  }
  func.func @transform_0(%arg0: i32) -> (i32, i32, i32, i32) {
    %c0_i32 = arith.constant 0 : i32
    %c0_i32_0 = arith.constant 0 : i32
    %c0_i32_1 = arith.constant 0 : i32
    %c0_i32_2 = arith.constant 0 : i32
    return %arg0, %c0_i32, %c0_i32_0, %c0_i32_1 : i32, i32, i32, i32
  }
  func.func @transform_1(%arg0: i32) -> (i32, i32, i32) {
    %c0_i32 = arith.constant 0 : i32
    %c0_i32_0 = arith.constant 0 : i32
    %c0_i32_1 = arith.constant 0 : i32
    return %arg0, %c0_i32, %c0_i32_0 : i32, i32, i32
  }
  func.func @transform_2(%arg0: i32) -> (i32, i32, i32) {
    %c0_i32 = arith.constant 0 : i32
    %c0_i32_0 = arith.constant 0 : i32
    %c0_i32_1 = arith.constant 0 : i32
    return %arg0, %c0_i32, %c0_i32_0 : i32, i32, i32
  }
  func.func @transform_3(%arg0: i32) -> (i32, i32, i32) {
    %c0_i32 = arith.constant 0 : i32
    %c0_i32_0 = arith.constant 0 : i32
    %c0_i32_1 = arith.constant 0 : i32
    return %arg0, %c0_i32, %c0_i32_0 : i32, i32, i32
  }
}

module attributes {stable_mosaic.version = 11 : i64} {
  func.func @_conv2_merged_kernel(%arg0: i32, %arg1: i32, %arg2: memref<1x1x32x256xbf16, #tpu.memory_space<vmem>>, %arg3: memref<1x16x88xbf16, #tpu.memory_space<vmem>>, %arg4: memref<1x16x1xf32, #tpu.memory_space<vmem>>, %arg5: memref<1x16x128xf32, #tpu.memory_space<vmem>>, %arg6: memref<88x128xbf16, #tpu.memory_space<vmem>>) attributes {dimension_semantics = [#tpu.dimension_semantics<parallel>, #tpu.dimension_semantics<arbitrary>], iteration_bounds = array<i64: 2, 2>, scalar_prefetch = 0 : i64, scratch_operands = 1 : i64, tpu.core_type = #tpu.core_type<tc>, window_params = [{transform_indices = @transform_0, window_bounds = array<i64: 1, 1, 32, 256>}, {transform_indices = @transform_1, window_bounds = array<i64: 1, 16, 88>}, {transform_indices = @transform_2, window_bounds = array<i64: 1, 16, 1>}, {transform_indices = @transform_3, window_bounds = array<i64: 1, 16, 128>}]} {
    %c0 = arith.constant 0 : index
    %c0_0 = arith.constant 0 : index
    %c0_1 = arith.constant 0 : index
    %c0_2 = arith.constant 0 : index
    %0 = vector.load %arg2[%c0, %c0_0, %c0_1, %c0_2] : memref<1x1x32x256xbf16, #tpu.memory_space<vmem>>, vector<1x1x32x256xbf16>
    %1 = vector.shape_cast %0 : vector<1x1x32x256xbf16> to vector<32x256xbf16>
    %c0_3 = arith.constant 0 : index
    %c0_4 = arith.constant 0 : index
    %c0_5 = arith.constant 0 : index
    %2 = vector.load %arg3[%c0_3, %c0_4, %c0_5] : memref<1x16x88xbf16, #tpu.memory_space<vmem>>, vector<1x16x88xbf16>
    %3 = vector.shape_cast %2 : vector<1x16x88xbf16> to vector<16x88xbf16>
    %4 = vector.extract_strided_slice %1 {offsets = [0, 0], sizes = [8, 128], strides = [1, 1]} : vector<32x256xbf16> to vector<8x128xbf16>
    %c0_6 = arith.constant 0 : index
    %c0_7 = arith.constant 0 : index
    %5 = vector.load %arg6[%c0_6, %c0_7] : memref<88x128xbf16, #tpu.memory_space<vmem>>, vector<8x128xbf16>
    tpu.vector_store %arg6[%c0_6, %c0_7], %4 {strides = array<i32>} : memref<88x128xbf16, #tpu.memory_space<vmem>>, vector<8x128xbf16>,
    %6 = vector.extract_strided_slice %1 {offsets = [8, 0], sizes = [8, 128], strides = [1, 1]} : vector<32x256xbf16> to vector<8x128xbf16>
    %c8 = arith.constant 8 : index
    %c0_8 = arith.constant 0 : index
    %7 = vector.load %arg6[%c8, %c0_8] : memref<88x128xbf16, #tpu.memory_space<vmem>>, vector<8x128xbf16>
    tpu.vector_store %arg6[%c8, %c0_8], %6 {strides = array<i32>} : memref<88x128xbf16, #tpu.memory_space<vmem>>, vector<8x128xbf16>,
    %8 = vector.extract_strided_slice %1 {offsets = [0, 1], sizes = [8, 128], strides = [1, 1]} : vector<32x256xbf16> to vector<8x128xbf16>
    %c16 = arith.constant 16 : index
    %c0_9 = arith.constant 0 : index
    %9 = vector.load %arg6[%c16, %c0_9] : memref<88x128xbf16, #tpu.memory_space<vmem>>, vector<8x128xbf16>
    tpu.vector_store %arg6[%c16, %c0_9], %8 {strides = array<i32>} : memref<88x128xbf16, #tpu.memory_space<vmem>>, vector<8x128xbf16>,
    %10 = vector.extract_strided_slice %1 {offsets = [16, 0], sizes = [8, 128], strides = [1, 1]} : vector<32x256xbf16> to vector<8x128xbf16>
    %c24 = arith.constant 24 : index
    %c0_10 = arith.constant 0 : index
    %11 = vector.load %arg6[%c24, %c0_10] : memref<88x128xbf16, #tpu.memory_space<vmem>>, vector<8x128xbf16>
    tpu.vector_store %arg6[%c24, %c0_10], %10 {strides = array<i32>} : memref<88x128xbf16, #tpu.memory_space<vmem>>, vector<8x128xbf16>,
    %12 = vector.extract_strided_slice %1 {offsets = [24, 0], sizes = [8, 128], strides = [1, 1]} : vector<32x256xbf16> to vector<8x128xbf16>
    %c32 = arith.constant 32 : index
    %c0_11 = arith.constant 0 : index
    %13 = vector.load %arg6[%c32, %c0_11] : memref<88x128xbf16, #tpu.memory_space<vmem>>, vector<8x128xbf16>
    tpu.vector_store %arg6[%c32, %c0_11], %12 {strides = array<i32>} : memref<88x128xbf16, #tpu.memory_space<vmem>>, vector<8x128xbf16>,
    %14 = vector.extract_strided_slice %1 {offsets = [16, 1], sizes = [8, 128], strides = [1, 1]} : vector<32x256xbf16> to vector<8x128xbf16>
    %c40 = arith.constant 40 : index
    %c0_12 = arith.constant 0 : index
    %15 = vector.load %arg6[%c40, %c0_12] : memref<88x128xbf16, #tpu.memory_space<vmem>>, vector<8x128xbf16>
    tpu.vector_store %arg6[%c40, %c0_12], %14 {strides = array<i32>} : memref<88x128xbf16, #tpu.memory_space<vmem>>, vector<8x128xbf16>,
    %16 = vector.extract_strided_slice %1 {offsets = [0, 9], sizes = [8, 128], strides = [1, 1]} : vector<32x256xbf16> to vector<8x128xbf16>
    %c48 = arith.constant 48 : index
    %c0_13 = arith.constant 0 : index
    %17 = vector.load %arg6[%c48, %c0_13] : memref<88x128xbf16, #tpu.memory_space<vmem>>, vector<8x128xbf16>
    tpu.vector_store %arg6[%c48, %c0_13], %16 {strides = array<i32>} : memref<88x128xbf16, #tpu.memory_space<vmem>>, vector<8x128xbf16>,
    %18 = vector.extract_strided_slice %1 {offsets = [8, 9], sizes = [8, 128], strides = [1, 1]} : vector<32x256xbf16> to vector<8x128xbf16>
    %c56 = arith.constant 56 : index
    %c0_14 = arith.constant 0 : index
    %19 = vector.load %arg6[%c56, %c0_14] : memref<88x128xbf16, #tpu.memory_space<vmem>>, vector<8x128xbf16>
    tpu.vector_store %arg6[%c56, %c0_14], %18 {strides = array<i32>} : memref<88x128xbf16, #tpu.memory_space<vmem>>, vector<8x128xbf16>,
    %20 = vector.extract_strided_slice %1 {offsets = [0, 10], sizes = [8, 128], strides = [1, 1]} : vector<32x256xbf16> to vector<8x128xbf16>
    %c64 = arith.constant 64 : index
    %c0_15 = arith.constant 0 : index
    %21 = vector.load %arg6[%c64, %c0_15] : memref<88x128xbf16, #tpu.memory_space<vmem>>, vector<8x128xbf16>
    tpu.vector_store %arg6[%c64, %c0_15], %20 {strides = array<i32>} : memref<88x128xbf16, #tpu.memory_space<vmem>>, vector<8x128xbf16>,
    %c0_i32 = arith.constant 0 : i32
    %22 = arith.cmpi eq, %arg1, %c0_i32 : i32
    %23 = arith.extui %22 : i1 to i32
    %c0_i32_16 = arith.constant 0 : i32
    %24 = arith.cmpi ne, %23, %c0_i32_16 : i32
    scf.if %24 {
      %28 = vector.extract_strided_slice %3 {offsets = [0, 0], sizes = [16, 72], strides = [1, 1]} : vector<16x88xbf16> to vector<16x72xbf16>
      %c0_18 = arith.constant 0 : index
      %c0_19 = arith.constant 0 : index
      %29 = vector.load %arg6[%c0_18, %c0_19] : memref<88x128xbf16, #tpu.memory_space<vmem>>, vector<72x128xbf16>
      %cst = arith.constant dense<0.000000e+00> : vector<16x128xf32>
      %30 = tpu.matmul %28, %29, %cst {dimension_numbers = #tpu.dot_dimension_numbers<[1], [0], [0], [1], [0, 0, 1, 1], [], []>} : vector<16x72xbf16>, vector<72x128xbf16>, vector<16x128xf32> -> vector<16x128xf32>
      %c0_20 = arith.constant 0 : index
      %c0_21 = arith.constant 0 : index
      %c0_22 = arith.constant 0 : index
      %31 = vector.load %arg4[%c0_20, %c0_21, %c0_22] : memref<1x16x1xf32, #tpu.memory_space<vmem>>, vector<1x16x1xf32>
      %32 = vector.shape_cast %31 : vector<1x16x1xf32> to vector<16x1xf32>
      %33 = vector.broadcast %32 : vector<16x1xf32> to vector<16x128xf32>
      %34 = arith.addf %30, %33 : vector<16x128xf32>
      %cst_23 = arith.constant 0.000000e+00 : f32
      %35 = vector.broadcast %cst_23 : f32 to vector<16x128xf32>
      %36 = arith.maximumf %34, %35 : vector<16x128xf32>
      %37 = arith.truncf %36 : vector<16x128xf32> to vector<16x128xbf16>
      %c72 = arith.constant 72 : index
      %c0_24 = arith.constant 0 : index
      %38 = vector.load %arg6[%c72, %c0_24] : memref<88x128xbf16, #tpu.memory_space<vmem>>, vector<16x128xbf16>
      tpu.vector_store %arg6[%c72, %c0_24], %37 {strides = array<i32>} : memref<88x128xbf16, #tpu.memory_space<vmem>>, vector<16x128xbf16>,
    } else {
    }
    %c1_i32 = arith.constant 1 : i32
    %25 = arith.cmpi eq, %arg1, %c1_i32 : i32
    %26 = arith.extui %25 : i1 to i32
    %c0_i32_17 = arith.constant 0 : i32
    %27 = arith.cmpi ne, %26, %c0_i32_17 : i32
    scf.if %27 {
      %c0_18 = arith.constant 0 : index
      %c0_19 = arith.constant 0 : index
      %28 = vector.load %arg6[%c0_18, %c0_19] : memref<88x128xbf16, #tpu.memory_space<vmem>>, vector<88x128xbf16>
      %cst = arith.constant dense<0.000000e+00> : vector<16x128xf32>
      %29 = tpu.matmul %3, %28, %cst {dimension_numbers = #tpu.dot_dimension_numbers<[1], [0], [0], [1], [0, 0, 1, 1], [], []>} : vector<16x88xbf16>, vector<88x128xbf16>, vector<16x128xf32> -> vector<16x128xf32>
      %c0_20 = arith.constant 0 : index
      %c0_21 = arith.constant 0 : index
      %c0_22 = arith.constant 0 : index
      %30 = vector.load %arg4[%c0_20, %c0_21, %c0_22] : memref<1x16x1xf32, #tpu.memory_space<vmem>>, vector<1x16x1xf32>
      %31 = vector.shape_cast %30 : vector<1x16x1xf32> to vector<16x1xf32>
      %32 = vector.broadcast %31 : vector<16x1xf32> to vector<16x128xf32>
      %33 = arith.addf %29, %32 : vector<16x128xf32>
      %cst_23 = arith.constant 0.000000e+00 : f32
      %34 = vector.broadcast %cst_23 : f32 to vector<16x128xf32>
      %35 = arith.maximumf %33, %34 : vector<16x128xf32>
      %c0_24 = arith.constant 0 : index
      %c0_25 = arith.constant 0 : index
      %c0_26 = arith.constant 0 : index
      %36 = vector.load %arg5[%c0_24, %c0_25, %c0_26] : memref<1x16x128xf32, #tpu.memory_space<vmem>>, vector<1x16x128xf32>
      %37 = vector.shape_cast %36 : vector<1x16x128xf32> to vector<16x128xf32>
      %38 = vector.shape_cast %35 : vector<16x128xf32> to vector<1x16x128xf32>
      tpu.vector_store %arg5[%c0_24, %c0_25, %c0_26], %38 {strides = array<i32>} : memref<1x16x128xf32, #tpu.memory_space<vmem>>, vector<1x16x128xf32>,
    } else {
    }
    return
  }
  func.func @transform_0(%arg0: i32, %arg1: i32) -> (i32, i32, i32, i32) {
    %c0_i32 = arith.constant 0 : i32
    %c0_i32_0 = arith.constant 0 : i32
    %c0_i32_1 = arith.constant 0 : i32
    return %arg1, %arg0, %c0_i32, %c0_i32_0 : i32, i32, i32, i32
  }
  func.func @transform_1(%arg0: i32, %arg1: i32) -> (i32, i32, i32) {
    %c0_i32 = arith.constant 0 : i32
    %c0_i32_0 = arith.constant 0 : i32
    %c0_i32_1 = arith.constant 0 : i32
    return %arg1, %c0_i32, %c0_i32_0 : i32, i32, i32
  }
  func.func @transform_2(%arg0: i32, %arg1: i32) -> (i32, i32, i32) {
    %c0_i32 = arith.constant 0 : i32
    %c0_i32_0 = arith.constant 0 : i32
    %c0_i32_1 = arith.constant 0 : i32
    return %arg1, %c0_i32, %c0_i32_0 : i32, i32, i32
  }
  func.func @transform_3(%arg0: i32, %arg1: i32) -> (i32, i32, i32) {
    %c0_i32 = arith.constant 0 : i32
    %c0_i32_0 = arith.constant 0 : i32
    %c0_i32_1 = arith.constant 0 : i32
    return %arg0, %c0_i32, %c0_i32_0 : i32, i32, i32
  }
}

</mosaic_0001>

<llo_original>
// kernel: dual_backbone_inj_forward.2
$region0: #{dual_backbone_inj_forward.2}
  #allocation0 [shape = 'u32[]', space=smem, size = 0x4, offset = 0x4, fixed_abs, tag = 'smem constant byte address 0x4 - core index']
  #allocation1 [shape = 'u32[144,128]{1,0:T(1,128)}', space=vmem, size = 0x12000, scoped, tag = 'internal scratch']
  #allocation2 [shape = 'bf16[72,768]{1,0:T(8,128)(2,1)}', space=vmem, size = 0x1b000, scoped, tag = 'scratch operand']
  %s0 = inlined_call_operand.vmem [shape: bf16[2,2,8,512], index: 0, kind: input, shape index: {}]
  %s1 = inlined_call_operand.vmem [shape: bf16[2,8,72], index: 1, kind: input, shape index: {}]
  %s2 = inlined_call_operand.vmem [shape: f32[2,8,1], index: 2, kind: input, shape index: {}]
  %s3 = inlined_call_operand.vmem [shape: bf16[2,8,768], index: 3, kind: output, shape index: {}]
  %s4 = sld [smem:[#allocation0]]
  $region45: #{dual_backbone_inj_forward.2} parent=0
    _
  %s6 = ssub.s32 1, %s4
  %s7 = scalar_select 0, %s6, %s4
  loop: start=0, step=1, limit=4
  $region2: #{dual_backbone_inj_forward.2} parent=0 // loop_pre_header
    _
  $region3: #{dual_backbone_inj_forward.2} parent=0 // loop_header
    %s9 = sphi 0, %s13
    %p10 = scmp.ge.s32.totalorder %s9, 4
    %s19 = sphi 0, %s21
    %s22 = sphi 0, %s19
    %s23 = sphi 0, %s22
    %s39 = sphi 0, %s23
    %s45 = sphi 0, %s47
    %s48 = sphi 0, %s45
    %s49 = sphi 0, %s48
    %s65 = sphi 0, %s49
    %s71 = sphi 0, %s73
    %s74 = sphi 0, %s71
    %s75 = sphi 0, %s74
    %s91 = sphi 0, %s75
    %s97 = sphi 0, %s99
    %s100 = sphi 0, %s97
    %s101 = sphi 0, %s100
    %s117 = sphi 0, %s101
  $region4: #{dual_backbone_inj_forward.2} parent=0 // loop_header_branch
    %12 = sbr.rel (%p10) target = $region8
  $region5: #{dual_backbone_inj_forward.2} parent=0 // loop_body
    %s14 = ssub.s32 %s9, 1
    %s15 = ssub.s32 %s9, 2
    %s16 = sadd.s32 %s9, 1
    %s17 = ssub.s32 %s9, %s16
    %p18 = scmp.eq.s32.totalorder %s17, 0
    %s20 = sadd.s32 %s19, 1
    %s21 = scalar_select %p18, %s19, %s20
    %p24 = pneg %p18
    %p25 = scmp.eq.s32.totalorder %s9, 1
    %p26 = por %p24, %p25
    %p27 = scmp.ne.s32.totalorder %s19, %s22
    %p28 = scmp.eq.s32.totalorder %s9, 0
    %p29 = por %p27, %p28
    %p30 = scmp.ne.s32.totalorder %s19, %s22
    %p31 = scmp.eq.s32.totalorder %s14, 1
    %p32 = por %p30, %p31
    %p33 = scmp.ne.s32.totalorder %s22, %s23
    %p34 = scmp.eq.s32.totalorder %s14, 0
    %p35 = por %p33, %p34
    %p36 = scmp.ne.s32.totalorder %s22, %s23
    %p37 = scmp.eq.s32.totalorder %s15, 1
    %p38 = por %p36, %p37
    %p40 = scmp.ne.s32.totalorder %s23, %s39
    %p41 = scmp.eq.s32.totalorder %s15, 0
    %p42 = por %p40, %p41
    %s43 = ssub.s32 %s9, %s16
    %p44 = scmp.eq.s32.totalorder %s43, 0
    %s46 = sadd.s32 %s45, 1
    %s47 = scalar_select %p44, %s45, %s46
    %p50 = pneg %p44
    %p51 = scmp.eq.s32.totalorder %s9, 1
    %p52 = por %p50, %p51
    %p53 = scmp.ne.s32.totalorder %s45, %s48
    %p54 = scmp.eq.s32.totalorder %s9, 0
    %p55 = por %p53, %p54
    %p56 = scmp.ne.s32.totalorder %s45, %s48
    %p57 = scmp.eq.s32.totalorder %s14, 1
    %p58 = por %p56, %p57
    %p59 = scmp.ne.s32.totalorder %s48, %s49
    %p60 = scmp.eq.s32.totalorder %s14, 0
    %p61 = por %p59, %p60
    %p62 = scmp.ne.s32.totalorder %s48, %s49
    %p63 = scmp.eq.s32.totalorder %s15, 1
    %p64 = por %p62, %p63
    %p66 = scmp.ne.s32.totalorder %s49, %s65
    %p67 = scmp.eq.s32.totalorder %s15, 0
    %p68 = por %p66, %p67
    %s69 = ssub.s32 %s9, %s16
    %p70 = scmp.eq.s32.totalorder %s69, 0
    %s72 = sadd.s32 %s71, 1
    %s73 = scalar_select %p70, %s71, %s72
    %p76 = pneg %p70
    %p77 = scmp.eq.s32.totalorder %s9, 1
    %p78 = por %p76, %p77
    %p79 = scmp.ne.s32.totalorder %s71, %s74
    %p80 = scmp.eq.s32.totalorder %s9, 0
    %p81 = por %p79, %p80
    %p82 = scmp.ne.s32.totalorder %s71, %s74
    %p83 = scmp.eq.s32.totalorder %s14, 1
    %p84 = por %p82, %p83
    %p85 = scmp.ne.s32.totalorder %s74, %s75
    %p86 = scmp.eq.s32.totalorder %s14, 0
    %p87 = por %p85, %p86
    %p88 = scmp.ne.s32.totalorder %s74, %s75
    %p89 = scmp.eq.s32.totalorder %s15, 1
    %p90 = por %p88, %p89
    %p92 = scmp.ne.s32.totalorder %s75, %s91
    %p93 = scmp.eq.s32.totalorder %s15, 0
    %p94 = por %p92, %p93
    %s95 = ssub.s32 %s9, %s16
    %p96 = scmp.eq.s32.totalorder %s95, 0
    %s98 = sadd.s32 %s97, 1
    %s99 = scalar_select %p96, %s97, %s98
    %p102 = pneg %p96
    %p103 = scmp.eq.s32.totalorder %s9, 1
    %p104 = por %p102, %p103
    %p105 = scmp.ne.s32.totalorder %s97, %s100
    %p106 = scmp.eq.s32.totalorder %s9, 0
    %p107 = por %p105, %p106
    %p108 = scmp.ne.s32.totalorder %s97, %s100
    %p109 = scmp.eq.s32.totalorder %s14, 1
    %p110 = por %p108, %p109
    %p111 = scmp.ne.s32.totalorder %s100, %s101
    %p112 = scmp.eq.s32.totalorder %s14, 0
    %p113 = por %p111, %p112
    %p114 = scmp.ne.s32.totalorder %s100, %s101
    %p115 = scmp.eq.s32.totalorder %s15, 1
    %p116 = por %p114, %p115
    %p118 = scmp.ne.s32.totalorder %s101, %s117
    %p119 = scmp.eq.s32.totalorder %s15, 0
    %p120 = por %p118, %p119
    %p121 = scmp.le.s32.totalorder 1, %s9
    %p122 = scmp.lt.s32.totalorder %s9, 3
    %p123 = pnand %p121, %p122
    %p124 = pneg %p123
    // Predicated region
    $region9: #{dual_backbone_inj_forward.2} parent=5 // pred_check
      _
    $region10: #{dual_backbone_inj_forward.2} parent=5 // pred_check_branch
      %126 = sbr.rel (%p123) target = $region12
    $region11: #{dual_backbone_inj_forward.2} parent=5 // pred_region
      %s127 = ssub.s32 %s9, 1
    $region12: #{dual_backbone_inj_forward.2} parent=5 // pred_fallthru
      _
    %p128 = scmp.lt.s32.totalorder %s9, 2
    // Predicated region
    $region13: #{dual_backbone_inj_forward.2} parent=5 // pred_check
      %p129 = pneg %p128
    $region14: #{dual_backbone_inj_forward.2} parent=5 // pred_check_branch
      %131 = sbr.rel (%p129) target = $region16
    $region15: #{dual_backbone_inj_forward.2} parent=5 // pred_region
      // Predicated region
      $region17: #{dual_backbone_inj_forward.2} parent=15 // pred_check
        %p132 = pneg %p29
      $region18: #{dual_backbone_inj_forward.2} parent=15 // pred_check_branch
        %134 = sbr.rel (%p132) target = $region20
      $region19: #{dual_backbone_inj_forward.2} parent=15 // pred_region
        %p135 = scmp.lt.s32.totalorder %s9, 1
        %s136 = scalar_select %p135, %s9, 1
        %s137 = smul.addr %s136, 8
        %s138 = smul.addr %s137, 4
        %s139 = scalar_lea.vmem %s0, %s138
      $region20: #{dual_backbone_inj_forward.2} parent=15 // pred_fallthru
        _
      // Predicated region
      $region21: #{dual_backbone_inj_forward.2} parent=15 // pred_check
        %p140 = pneg %p55
      $region22: #{dual_backbone_inj_forward.2} parent=15 // pred_check_branch
        %142 = sbr.rel (%p140) target = $region24
      $region23: #{dual_backbone_inj_forward.2} parent=15 // pred_region
        %p143 = scmp.lt.s32.totalorder %s9, 1
        %s144 = scalar_select %p143, %s9, 1
        %s145 = smul.addr %s144, 4
        %s146 = scalar_lea.vmem %s1, %s145
      $region24: #{dual_backbone_inj_forward.2} parent=15 // pred_fallthru
        _
      // Predicated region
      $region25: #{dual_backbone_inj_forward.2} parent=15 // pred_check
        %p147 = pneg %p81
      $region26: #{dual_backbone_inj_forward.2} parent=15 // pred_check_branch
        %149 = sbr.rel (%p147) target = $region28
      $region27: #{dual_backbone_inj_forward.2} parent=15 // pred_region
        %p150 = scmp.lt.s32.totalorder %s9, 1
        %s151 = scalar_select %p150, %s9, 1
        %s152 = smul.addr %s151, 8
        %s153 = scalar_lea.vmem %s2, %s152
      $region28: #{dual_backbone_inj_forward.2} parent=15 // pred_fallthru
        _
    $region16: #{dual_backbone_inj_forward.2} parent=5 // pred_fallthru
      _
    %p154 = scmp.le.s32.totalorder 1, %s9
    %p155 = scmp.lt.s32.totalorder %s9, 3
    %p156 = pnand %p154, %p155
    %p157 = pneg %p156
    // Predicated region
    $region29: #{dual_backbone_inj_forward.2} parent=5 // pred_check
      _
    $region30: #{dual_backbone_inj_forward.2} parent=5 // pred_check_branch
      %159 = sbr.rel (%p156) target = $region32
    $region31: #{dual_backbone_inj_forward.2} parent=5 // pred_region
      %s160 = ssub.s32 %s9, 1
      %p161 = scmp.lt.s32.totalorder %s14, 1
      %s162 = scalar_select %p161, %s14, 1
      %s163 = smul.addr %s162, 8
      %s164 = smul.addr %s163, 4
      %s165 = scalar_lea.vmem %s0, %s164
      %p166 = pneg %p35
      %p167 = pneg %p32
      %p168 = scmp.lt.s32.totalorder %s14, 1
      %s169 = scalar_select %p168, %s14, 1
      %s170 = smul.addr %s169, 4
      %s171 = scalar_lea.vmem %s1, %s170
      %p172 = pneg %p61
      %p173 = pneg %p58
      %p174 = scmp.lt.s32.totalorder %s14, 1
      %s175 = scalar_select %p174, %s14, 1
      %s176 = smul.addr %s175, 8
      %s177 = scalar_lea.vmem %s2, %s176
      %p178 = pneg %p87
      %p179 = pneg %p84
      %p180 = pneg %p113
      %p181 = pneg %p110
      %p182 = scmp.lt.s32.totalorder %s14, 1
      %s183 = scalar_select %p182, %s14, 1
      %s184 = smul.addr %s183, 6
      %s185 = smul.addr %s184, 4
      %s186 = scalar_lea.vmem %s3, %s185
      %p187 = scmp.lt.s32.totalorder %s14, 1
      %s188 = scalar_select %p187, %s14, 1
      %s189 = smul.addr %s188, 8
      %s190 = smul.addr %s189, 4
      %s191 = scalar_lea.vmem %s0, %s190
      %p192 = scmp.lt.s32.totalorder %s14, 1
      %s193 = scalar_select %p192, %s14, 1
      %s194 = smul.addr %s193, 4
      %s195 = scalar_lea.vmem %s1, %s194
      %p196 = scmp.lt.s32.totalorder %s14, 1
      %s197 = scalar_select %p196, %s14, 1
      %s198 = smul.addr %s197, 8
      %s199 = scalar_lea.vmem %s2, %s198
      %p200 = scmp.lt.s32.totalorder %s14, 1
      %s201 = scalar_select %p200, %s14, 1
      %s202 = smul.addr %s201, 6
      %s203 = smul.addr %s202, 4
      %s204 = scalar_lea.vmem %s3, %s203
      %v206 = vld [vmem:[%s191] sm:$0xff]
      %v207 = vld [vmem:[%s191 + $0x8] sm:$0xff]
      %208 = vst [vmem:[#allocation2] sm:$0xff] %v206
      %209 = vst [vmem:[#allocation2 + $0x8] sm:$0xf] %v207
      %212 = vrot.lane.b32.xlu0 %v206, 127
      %v213 = vpop.permute.xlu0 %212
      %214 = vrot.lane.b32.xlu0 %v207, 127
      %v215 = vpop.permute.xlu0 %214
      %v216 = vrot.slane %v213, 4
      %v217 = vrot.slane %v215, 4
      %vm218 = vcmask 1043456
      %v219 = vsel %vm218, %v216, %v217
      %vm220 = vcmask 1039360
      %v221 = vsel %vm220, %v213, %v219
      %v222 = vsel %vm220, %v215, %v217
      %225 = vst [vmem:[#allocation2 + $0x18] sm:$0xff] %v221
      %226 = vst [vmem:[#allocation2 + $0x20] sm:$0xf] %v222
      %227 = vrot.lane.b32.xlu0 %v206, 126
      %v228 = vpop.permute.xlu0 %227
      %229 = vrot.lane.b32.xlu0 %v207, 126
      %v230 = vpop.permute.xlu0 %229
      %v231 = vrot.slane %v228, 4
      %v232 = vrot.slane %v230, 4
      %v233 = vsel %vm218, %v231, %v232
      %vm234 = vcmask 1031168
      %v235 = vsel %vm234, %v228, %v233
      %v236 = vsel %vm234, %v230, %v232
      %239 = vst [vmem:[#allocation2 + $0x30] sm:$0xff] %v235
      %240 = vst [vmem:[#allocation2 + $0x38] sm:$0xf] %v236
      %241 = vrot.lane.b32.xlu0 %v206, 110
      %v242 = vpop.permute.xlu0 %241
      %243 = vrot.lane.b32.xlu0 %v207, 110
      %v244 = vpop.permute.xlu0 %243
      %v245 = vrot.slane %v242, 4
      %v246 = vrot.slane %v244, 4
      %v247 = vsel %vm218, %v245, %v246
      %vm248 = vcmask 900096
      %v249 = vsel %vm248, %v242, %v247
      %v250 = vsel %vm248, %v244, %v246
      %253 = vst [vmem:[#allocation2 + $0x48] sm:$0xff] %v249
      %254 = vst [vmem:[#allocation2 + $0x50] sm:$0xf] %v250
      %255 = vrot.lane.b32.xlu0 %v206, 109
      %v256 = vpop.permute.xlu0 %255
      %257 = vrot.lane.b32.xlu0 %v207, 109
      %v258 = vpop.permute.xlu0 %257
      %v259 = vrot.slane %v256, 4
      %v260 = vrot.slane %v258, 4
      %v261 = vsel %vm218, %v259, %v260
      %vm262 = vcmask 891904
      %v263 = vsel %vm262, %v256, %v261
      %v264 = vsel %vm262, %v258, %v260
      %267 = vst [vmem:[#allocation2 + $0x60] sm:$0xff] %v263
      %268 = vst [vmem:[#allocation2 + $0x68] sm:$0xf] %v264
      %269 = vrot.lane.b32.xlu0 %v206, 108
      %v270 = vpop.permute.xlu0 %269
      %271 = vrot.lane.b32.xlu0 %v207, 108
      %v272 = vpop.permute.xlu0 %271
      %v273 = vrot.slane %v270, 4
      %v274 = vrot.slane %v272, 4
      %v275 = vsel %vm218, %v273, %v274
      %vm276 = vcmask 883712
      %v277 = vsel %vm276, %v270, %v275
      %v278 = vsel %vm276, %v272, %v274
      %281 = vst [vmem:[#allocation2 + $0x78] sm:$0xff] %v277
      %282 = vst [vmem:[#allocation2 + $0x80] sm:$0xf] %v278
      %283 = vrot.lane.b32.xlu0 %v206, 92
      %v284 = vpop.permute.xlu0 %283
      %285 = vrot.lane.b32.xlu0 %v207, 92
      %v286 = vpop.permute.xlu0 %285
      %v287 = vrot.slane %v284, 4
      %v288 = vrot.slane %v286, 4
      %v289 = vsel %vm218, %v287, %v288
      %vm290 = vcmask 752640
      %v291 = vsel %vm290, %v284, %v289
      %v292 = vsel %vm290, %v286, %v288
      %295 = vst [vmem:[#allocation2 + $0x90] sm:$0xff] %v291
      %296 = vst [vmem:[#allocation2 + $0x98] sm:$0xf] %v292
      %297 = vrot.lane.b32.xlu0 %v206, 91
      %v298 = vpop.permute.xlu0 %297
      %299 = vrot.lane.b32.xlu0 %v207, 91
      %v300 = vpop.permute.xlu0 %299
      %v301 = vrot.slane %v298, 4
      %v302 = vrot.slane %v300, 4
      %v303 = vsel %vm218, %v301, %v302
      %vm304 = vcmask 744448
      %v305 = vsel %vm304, %v298, %v303
      %v306 = vsel %vm304, %v300, %v302
      %309 = vst [vmem:[#allocation2 + $0xa8] sm:$0xff] %v305
      %310 = vst [vmem:[#allocation2 + $0xb0] sm:$0xf] %v306
      %311 = vrot.lane.b32.xlu0 %v206, 90
      %v312 = vpop.permute.xlu0 %311
      %313 = vrot.lane.b32.xlu0 %v207, 90
      %v314 = vpop.permute.xlu0 %313
      %v315 = vrot.slane %v312, 4
      %v316 = vrot.slane %v314, 4
      %v317 = vsel %vm218, %v315, %v316
      %vm318 = vcmask 736256
      %v319 = vsel %vm318, %v312, %v317
      %v320 = vsel %vm318, %v314, %v316
      %323 = vst [vmem:[#allocation2 + $0xc0] sm:$0xff] %v319
      %324 = vst [vmem:[#allocation2 + $0xc8] sm:$0xf] %v320
      %s325 = scalar_lea.vmem %s191, 16
      %v326 = vld [vmem:[%s325] sm:$0xff]
      %v327 = vld [vmem:[%s325 + $0x8] sm:$0xff]
      %328 = vst [vmem:[#allocation2 + $0xc] sm:$0xff] %v326
      %329 = vst [vmem:[#allocation2 + $0x14] sm:$0xf] %v327
      %332 = vrot.lane.b32.xlu0 %v326, 127
      %v333 = vpop.permute.xlu0 %332
      %334 = vrot.lane.b32.xlu0 %v327, 127
      %v335 = vpop.permute.xlu0 %334
      %v336 = vrot.slane %v333, 4
      %v337 = vrot.slane %v335, 4
      %v338 = vsel %vm218, %v336, %v337
      %v339 = vsel %vm220, %v333, %v338
      %v340 = vsel %vm220, %v335, %v337
      %343 = vst [vmem:[#allocation2 + $0x24] sm:$0xff] %v339
      %344 = vst [vmem:[#allocation2 + $0x2c] sm:$0xf] %v340
      %345 = vrot.lane.b32.xlu0 %v326, 126
      %v346 = vpop.permute.xlu0 %345
      %347 = vrot.lane.b32.xlu0 %v327, 126
      %v348 = vpop.permute.xlu0 %347
      %v349 = vrot.slane %v346, 4
      %v350 = vrot.slane %v348, 4
      %v351 = vsel %vm218, %v349, %v350
      %v352 = vsel %vm234, %v346, %v351
      %v353 = vsel %vm234, %v348, %v350
      %356 = vst [vmem:[#allocation2 + $0x3c] sm:$0xff] %v352
      %357 = vst [vmem:[#allocation2 + $0x44] sm:$0xf] %v353
      %358 = vrot.lane.b32.xlu0 %v326, 110
      %v359 = vpop.permute.xlu0 %358
      %360 = vrot.lane.b32.xlu0 %v327, 110
      %v361 = vpop.permute.xlu0 %360
      %v362 = vrot.slane %v359, 4
      %v363 = vrot.slane %v361, 4
      %v364 = vsel %vm218, %v362, %v363
      %v365 = vsel %vm248, %v359, %v364
      %v366 = vsel %vm248, %v361, %v363
      %369 = vst [vmem:[#allocation2 + $0x54] sm:$0xff] %v365
      %370 = vst [vmem:[#allocation2 + $0x5c] sm:$0xf] %v366
      %371 = vrot.lane.b32.xlu0 %v326, 109
      %v372 = vpop.permute.xlu0 %371
      %373 = vrot.lane.b32.xlu0 %v327, 109
      %v374 = vpop.permute.xlu0 %373
      %v375 = vrot.slane %v372, 4
      %v376 = vrot.slane %v374, 4
      %v377 = vsel %vm218, %v375, %v376
      %v378 = vsel %vm262, %v372, %v377
      %v379 = vsel %vm262, %v374, %v376
      %382 = vst [vmem:[#allocation2 + $0x6c] sm:$0xff] %v378
      %383 = vst [vmem:[#allocation2 + $0x74] sm:$0xf] %v379
      %384 = vrot.lane.b32.xlu0 %v326, 108
      %v385 = vpop.permute.xlu0 %384
      %386 = vrot.lane.b32.xlu0 %v327, 108
      %v387 = vpop.permute.xlu0 %386
      %v388 = vrot.slane %v385, 4
      %v389 = vrot.slane %v387, 4
      %v390 = vsel %vm218, %v388, %v389
      %v391 = vsel %vm276, %v385, %v390
      %v392 = vsel %vm276, %v387, %v389
      %395 = vst [vmem:[#allocation2 + $0x84] sm:$0xff] %v391
      %396 = vst [vmem:[#allocation2 + $0x8c] sm:$0xf] %v392
      %397 = vrot.lane.b32.xlu0 %v326, 92
      %v398 = vpop.permute.xlu0 %397
      %399 = vrot.lane.b32.xlu0 %v327, 92
      %v400 = vpop.permute.xlu0 %399
      %v401 = vrot.slane %v398, 4
      %v402 = vrot.slane %v400, 4
      %v403 = vsel %vm218, %v401, %v402
      %v404 = vsel %vm290, %v398, %v403
      %v405 = vsel %vm290, %v400, %v402
      %408 = vst [vmem:[#allocation2 + $0x9c] sm:$0xff] %v404
      %409 = vst [vmem:[#allocation2 + $0xa4] sm:$0xf] %v405
      %410 = vrot.lane.b32.xlu0 %v326, 91
      %v411 = vpop.permute.xlu0 %410
      %412 = vrot.lane.b32.xlu0 %v327, 91
      %v413 = vpop.permute.xlu0 %412
      %v414 = vrot.slane %v411, 4
      %v415 = vrot.slane %v413, 4
      %v416 = vsel %vm218, %v414, %v415
      %v417 = vsel %vm304, %v411, %v416
      %v418 = vsel %vm304, %v413, %v415
      %421 = vst [vmem:[#allocation2 + $0xb4] sm:$0xff] %v417
      %422 = vst [vmem:[#allocation2 + $0xbc] sm:$0xf] %v418
      %423 = vrot.lane.b32.xlu0 %v326, 90
      %v424 = vpop.permute.xlu0 %423
      %425 = vrot.lane.b32.xlu0 %v327, 90
      %v426 = vpop.permute.xlu0 %425
      %v427 = vrot.slane %v424, 4
      %v428 = vrot.slane %v426, 4
      %v429 = vsel %vm218, %v427, %v428
      %v430 = vsel %vm318, %v424, %v429
      %v431 = vsel %vm318, %v426, %v428
      %434 = vst [vmem:[#allocation2 + $0xcc] sm:$0xff] %v430
      %435 = vst [vmem:[#allocation2 + $0xd4] sm:$0xf] %v431
      %v436 = vld [vmem:[%s195] sm:$0xf]
      %v437 = vld [vmem:[#allocation2] sm:$0xff]
      %v438 = vld [vmem:[#allocation2 + $0x8] sm:$0xff]
      %v439 = vld [vmem:[#allocation2 + $0x10] sm:$0xff]
      %v440 = vld [vmem:[#allocation2 + $0x18] sm:$0xff]
      %v441 = vld [vmem:[#allocation2 + $0x20] sm:$0xff]
      %v442 = vld [vmem:[#allocation2 + $0x28] sm:$0xff]
      %v443 = vld [vmem:[#allocation2 + $0x30] sm:$0xff]
      %v444 = vld [vmem:[#allocation2 + $0x38] sm:$0xff]
      %v445 = vld [vmem:[#allocation2 + $0x40] sm:$0xff]
      %v446 = vld [vmem:[#allocation2 + $0x48] sm:$0xff]
      %v447 = vld [vmem:[#allocation2 + $0x50] sm:$0xff]
      %v448 = vld [vmem:[#allocation2 + $0x58] sm:$0xff]
      %v449 = vld [vmem:[#allocation2 + $0x60] sm:$0xff]
      %v450 = vld [vmem:[#allocation2 + $0x68] sm:$0xff]
      %v451 = vld [vmem:[#allocation2 + $0x70] sm:$0xff]
      %v452 = vld [vmem:[#allocation2 + $0x78] sm:$0xff]
      %v453 = vld [vmem:[#allocation2 + $0x80] sm:$0xff]
      %v454 = vld [vmem:[#allocation2 + $0x88] sm:$0xff]
      %v455 = vld [vmem:[#allocation2 + $0x90] sm:$0xff]
      %v456 = vld [vmem:[#allocation2 + $0x98] sm:$0xff]
      %v457 = vld [vmem:[#allocation2 + $0xa0] sm:$0xff]
      %v458 = vld [vmem:[#allocation2 + $0xa8] sm:$0xff]
      %v459 = vld [vmem:[#allocation2 + $0xb0] sm:$0xff]
      %v460 = vld [vmem:[#allocation2 + $0xb8] sm:$0xff]
      %v461 = vld [vmem:[#allocation2 + $0xc0] sm:$0xff]
      %v462 = vld [vmem:[#allocation2 + $0xc8] sm:$0xff]
      %v463 = vld [vmem:[#allocation2 + $0xd0] sm:$0xff]
      %v464 = vld [vmem:[%s199] sm:$0xff]
      %466 = vset.pattern.permute.xlu0 0
      %467 = vperm.xlu0 %466, %v464
      %v468 = vpop.permute.xlu0 %467
      %v497 = vunpack.c.l.b16 %v437
      %v498 = vunpack.c.h.b16 %v437
      %v499 = vunpack.c.l.b16 %v438
      %v500 = vunpack.c.h.b16 %v438
      %v501 = vunpack.c.l.b16 %v439
      %v502 = vunpack.c.h.b16 %v439
      %v503 = vunpack.c.l.b16 %v440
      %v504 = vunpack.c.h.b16 %v440
      %v505 = vunpack.c.l.b16 %v441
      %v506 = vunpack.c.h.b16 %v441
      %v507 = vunpack.c.l.b16 %v442
      %v508 = vunpack.c.h.b16 %v442
      %v509 = vunpack.c.l.b16 %v443
      %v510 = vunpack.c.h.b16 %v443
      %v511 = vunpack.c.l.b16 %v444
      %v512 = vunpack.c.h.b16 %v444
      %v513 = vunpack.c.l.b16 %v445
      %v514 = vunpack.c.h.b16 %v445
      %v515 = vunpack.c.l.b16 %v446
      %v516 = vunpack.c.h.b16 %v446
      %v517 = vunpack.c.l.b16 %v447
      %v518 = vunpack.c.h.b16 %v447
      %v519 = vunpack.c.l.b16 %v448
      %v520 = vunpack.c.h.b16 %v448
      %v521 = vunpack.c.l.b16 %v449
      %v522 = vunpack.c.h.b16 %v449
      %v523 = vunpack.c.l.b16 %v450
      %v524 = vunpack.c.h.b16 %v450
      %v525 = vunpack.c.l.b16 %v451
      %v526 = vunpack.c.h.b16 %v451
      %v527 = vunpack.c.l.b16 %v452
      %v528 = vunpack.c.h.b16 %v452
      %v529 = vunpack.c.l.b16 %v453
      %v530 = vunpack.c.h.b16 %v453
      %v531 = vunpack.c.l.b16 %v454
      %v532 = vunpack.c.h.b16 %v454
      %v533 = vunpack.c.l.b16 %v455
      %v534 = vunpack.c.h.b16 %v455
      %v535 = vunpack.c.l.b16 %v456
      %v536 = vunpack.c.h.b16 %v456
      %v537 = vunpack.c.l.b16 %v457
      %v538 = vunpack.c.h.b16 %v457
      %v539 = vunpack.c.l.b16 %v458
      %v540 = vunpack.c.h.b16 %v458
      %v541 = vunpack.c.l.b16 %v459
      %v542 = vunpack.c.h.b16 %v459
      %v543 = vunpack.c.l.b16 %v460
      %v544 = vunpack.c.h.b16 %v460
      %v545 = vunpack.c.l.b16 %v461
      %v546 = vunpack.c.h.b16 %v461
      %v547 = vunpack.c.l.b16 %v462
      %v548 = vunpack.c.h.b16 %v462
      %v549 = vunpack.c.l.b16 %v463
      %v550 = vunpack.c.h.b16 %v463
      %v551 = vpack.c.b16 %v503, %v497
      %v552 = vpack.c.b16 %v504, %v498
      %v553 = vpack.c.b16 %v505, %v499
      %v554 = vpack.c.b16 %v506, %v500
      %v555 = vpack.c.b16 %v507, %v501
      %v556 = vpack.c.b16 %v508, %v502
      %v557 = vpack.c.b16 %v515, %v509
      %v558 = vpack.c.b16 %v516, %v510
      %v559 = vpack.c.b16 %v517, %v511
      %v560 = vpack.c.b16 %v518, %v512
      %v561 = vpack.c.b16 %v519, %v513
      %v562 = vpack.c.b16 %v520, %v514
      %v563 = vpack.c.b16 %v527, %v521
      %v564 = vpack.c.b16 %v528, %v522
      %v565 = vpack.c.b16 %v529, %v523
      %v566 = vpack.c.b16 %v530, %v524
      %v567 = vpack.c.b16 %v531, %v525
      %v568 = vpack.c.b16 %v532, %v526
      %v569 = vpack.c.b16 %v539, %v533
      %v570 = vpack.c.b16 %v540, %v534
      %v571 = vpack.c.b16 %v541, %v535
      %v572 = vpack.c.b16 %v542, %v536
      %v573 = vpack.c.b16 %v543, %v537
      %v574 = vpack.c.b16 %v544, %v538
      %v575 = vpack.c.b16 %v545, %v545
      %v576 = vpack.c.b16 %v546, %v546
      %v577 = vpack.c.b16 %v547, %v547
      %v578 = vpack.c.b16 %v548, %v548
      %v579 = vpack.c.b16 %v549, %v549
      %v580 = vpack.c.b16 %v550, %v550
      %vm605 = vcmask 588800
      %v607 = vsel %vm605, %v436, 0
      %vm609 = vcmask 1043456
      %v611 = vsel %vm609, %v575, 0
      %v614 = vsel %vm609, %v576, 0
      %v617 = vsel %vm609, %v577, 0
      %v620 = vsel %vm609, %v578, 0
      %v623 = vsel %vm609, %v579, 0
      %v626 = vsel %vm609, %v580, 0
      %628 = vmatprep.subr.bf16.mxu0 %v552
      %629 = vmatpush1.bf16.msra.mxu0 %v551
      %630 = vmatprep.subr.bf16.mxu0 %v558
      %631 = vmatpush1.bf16.msra.mxu0 %v557
      %632 = vmatprep.subr.bf16.mxu0 %v564
      %633 = vmatpush1.bf16.msra.mxu0 %v563
      %634 = vmatprep.subr.bf16.mxu0 %v570
      %635 = vmatpush1.bf16.msra.mxu0 %v569
      %636 = vmatprep.subr.bf16.mxu0 %v614
      %637 = vmatpush1.bf16.msra.mxu0 %v611
      %638 = vmatprep.subr.bf16.mxu0 0
      %639 = vmatpush1.bf16.msra.mxu0 0
      %640 = vmatprep.subr.bf16.mxu0 0
      %641 = vmatpush1.bf16.msra.mxu0 0
      %642 = vmatprep.subr.bf16.mxu0 0
      %643 = vmatpush1.bf16.msra.mxu0 0
      %644 = vmatprep.subr.bf16.mxu0 0
      %645 = vmatpush1.bf16.msra.mxu0 0
      %646 = vmatprep.subr.bf16.mxu0 0
      %647 = vmatpush1.bf16.msra.mxu0 0
      %648 = vmatprep.subr.bf16.mxu0 0
      %649 = vmatpush1.bf16.msra.mxu0 0
      %650 = vmatprep.subr.bf16.mxu0 0
      %651 = vmatpush1.bf16.msra.mxu0 0
      %652 = vmatprep.subr.bf16.mxu0 0
      %653 = vmatpush1.bf16.msra.mxu0 0
      %654 = vmatprep.subr.bf16.mxu0 0
      %655 = vmatpush1.bf16.msra.mxu0 0
      %656 = vmatprep.subr.bf16.mxu0 0
      %657 = vmatpush1.bf16.msra.mxu0 0
      %658 = vmatprep.subr.bf16.mxu0 0
      %659 = vmatpush1.bf16.msra.mxu0 0
      %660 = vmatprep.mubr.bf16.mxu0 0
      %661 = vmatmul.mubr.bf16.gmra.mrb[0].mxu0 %v607
      %v662 = vpop.f32.mrb[0].mxu0
      %v663 = vadd.f32 %v468, %v662
      %v664 = vpop.f32.mrb[0].mxu0
      %v665 = vadd.f32 %v468, %v664
      %v666 = vpop.f32.mrb[0].mxu0
      %v667 = vpop.f32.mrb[0].mxu0
      %668 = vdwg.mxu0
      %669 = vmatprep.subr.bf16.mxu0 %v554
      %670 = vmatpush1.bf16.msra.mxu0 %v553
      %671 = vmatprep.subr.bf16.mxu0 %v560
      %672 = vmatpush1.bf16.msra.mxu0 %v559
      %673 = vmatprep.subr.bf16.mxu0 %v566
      %674 = vmatpush1.bf16.msra.mxu0 %v565
      %675 = vmatprep.subr.bf16.mxu0 %v572
      %676 = vmatpush1.bf16.msra.mxu0 %v571
      %677 = vmatprep.subr.bf16.mxu0 %v620
      %678 = vmatpush1.bf16.msra.mxu0 %v617
      %679 = vmatprep.subr.bf16.mxu0 0
      %680 = vmatpush1.bf16.msra.mxu0 0
      %681 = vmatprep.subr.bf16.mxu0 0
      %682 = vmatpush1.bf16.msra.mxu0 0
      %683 = vmatprep.subr.bf16.mxu0 0
      %684 = vmatpush1.bf16.msra.mxu0 0
      %685 = vmatprep.subr.bf16.mxu0 0
      %686 = vmatpush1.bf16.msra.mxu0 0
      %687 = vmatprep.subr.bf16.mxu0 0
      %688 = vmatpush1.bf16.msra.mxu0 0
      %689 = vmatprep.subr.bf16.mxu0 0
      %690 = vmatpush1.bf16.msra.mxu0 0
      %691 = vmatprep.subr.bf16.mxu0 0
      %692 = vmatpush1.bf16.msra.mxu0 0
      %693 = vmatprep.subr.bf16.mxu0 0
      %694 = vmatpush1.bf16.msra.mxu0 0
      %695 = vmatprep.subr.bf16.mxu0 0
      %696 = vmatpush1.bf16.msra.mxu0 0
      %697 = vmatprep.subr.bf16.mxu0 0
      %698 = vmatpush1.bf16.msra.mxu0 0
      %699 = vmatprep.subr.bf16.mxu0 0
      %700 = vmatpush1.bf16.msra.mxu0 0
      %701 = vmatprep.mubr.bf16.mxu0 0
      %702 = vmatmul.mubr.bf16.gmra.mrb[0].mxu0 %v607
      %v703 = vpop.f32.mrb[0].mxu0
      %v704 = vadd.f32 %v468, %v703
      %v705 = vpop.f32.mrb[0].mxu0
      %v706 = vadd.f32 %v468, %v705
      %v707 = vpop.f32.mrb[0].mxu0
      %v708 = vpop.f32.mrb[0].mxu0
      %709 = vdwg.mxu0
      %710 = vmatprep.subr.bf16.mxu0 %v556
      %711 = vmatpush1.bf16.msra.mxu0 %v555
      %712 = vmatprep.subr.bf16.mxu0 %v562
      %713 = vmatpush1.bf16.msra.mxu0 %v561
      %714 = vmatprep.subr.bf16.mxu0 %v568
      %715 = vmatpush1.bf16.msra.mxu0 %v567
      %716 = vmatprep.subr.bf16.mxu0 %v574
      %717 = vmatpush1.bf16.msra.mxu0 %v573
      %718 = vmatprep.subr.bf16.mxu0 %v626
      %719 = vmatpush1.bf16.msra.mxu0 %v623
      %720 = vmatprep.subr.bf16.mxu0 0
      %721 = vmatpush1.bf16.msra.mxu0 0
      %722 = vmatprep.subr.bf16.mxu0 0
      %723 = vmatpush1.bf16.msra.mxu0 0
      %724 = vmatprep.subr.bf16.mxu0 0
      %725 = vmatpush1.bf16.msra.mxu0 0
      %726 = vmatprep.subr.bf16.mxu0 0
      %727 = vmatpush1.bf16.msra.mxu0 0
      %728 = vmatprep.subr.bf16.mxu0 0
      %729 = vmatpush1.bf16.msra.mxu0 0
      %730 = vmatprep.subr.bf16.mxu0 0
      %731 = vmatpush1.bf16.msra.mxu0 0
      %732 = vmatprep.subr.bf16.mxu0 0
      %733 = vmatpush1.bf16.msra.mxu0 0
      %734 = vmatprep.subr.bf16.mxu0 0
      %735 = vmatpush1.bf16.msra.mxu0 0
      %736 = vmatprep.subr.bf16.mxu0 0
      %737 = vmatpush1.bf16.msra.mxu0 0
      %738 = vmatprep.subr.bf16.mxu0 0
      %739 = vmatpush1.bf16.msra.mxu0 0
      %740 = vmatprep.subr.bf16.mxu0 0
      %741 = vmatpush1.bf16.msra.mxu0 0
      %742 = vmatprep.mubr.bf16.mxu0 0
      %743 = vmatmul.mubr.bf16.gmra.mrb[0].mxu0 %v607
      %v744 = vpop.f32.mrb[0].mxu0
      %v745 = vadd.f32 %v468, %v744
      %v746 = vpop.f32.mrb[0].mxu0
      %v747 = vadd.f32 %v468, %v746
      %v748 = vpop.f32.mrb[0].mxu0
      %v749 = vpop.f32.mrb[0].mxu0
      %750 = vdwg.mxu0
      %v751 = vmax.f32 %v663, 0.0
      %v752 = vmax.f32 %v665, 0.0
      %v753 = vmax.f32 %v704, 0.0
      %v754 = vmax.f32 %v706, 0.0
      %v755 = vmax.f32 %v745, 0.0
      %v756 = vmax.f32 %v747, 0.0
      %v757 = vpack.c.bf16 %v751, %v751
      %v758 = vpack.c.bf16 %v752, %v752
      %v759 = vpack.c.bf16 %v753, %v753
      %v760 = vpack.c.bf16 %v754, %v754
      %v761 = vpack.c.bf16 %v755, %v755
      %v762 = vpack.c.bf16 %v756, %v756
      %v769 = vunpack.c.l.b16 %v757
      %v770 = vunpack.c.l.b16 %v758
      %v771 = vunpack.c.l.b16 %v759
      %v772 = vunpack.c.l.b16 %v760
      %v773 = vunpack.c.l.b16 %v761
      %v774 = vunpack.c.l.b16 %v762
      %v775 = vpack.c.b16 %v770, %v769
      %v776 = vpack.c.b16 %v772, %v771
      %v777 = vpack.c.b16 %v774, %v773
      %781 = vst [vmem:[%s204] sm:$0xff] %v775
      %782 = vst [vmem:[%s204 + $0x8] sm:$0xff] %v776
      %783 = vst [vmem:[%s204 + $0x10] sm:$0xff] %v777
      %p784 = scmp.lt.s32.totalorder %s14, 1
      %s785 = scalar_select %p784, %s14, 1
      %s786 = smul.addr %s785, 6
      %s787 = smul.addr %s786, 4
      %s788 = scalar_lea.vmem %s3, %s787
      // Predicated region
      $region33: #{dual_backbone_inj_forward.2} parent=31 // pred_check
        %p789 = pneg %p110
      $region34: #{dual_backbone_inj_forward.2} parent=31 // pred_check_branch
        %791 = sbr.rel (%p789) target = $region36
      $region35: #{dual_backbone_inj_forward.2} parent=31 // pred_region
        _
      $region36: #{dual_backbone_inj_forward.2} parent=31 // pred_fallthru
        _
    $region32: #{dual_backbone_inj_forward.2} parent=5 // pred_fallthru
      _
    %p792 = scmp.le.s32.totalorder 2, %s9
    // Predicated region
    $region37: #{dual_backbone_inj_forward.2} parent=5 // pred_check
      %p793 = pneg %p792
    $region38: #{dual_backbone_inj_forward.2} parent=5 // pred_check_branch
      %795 = sbr.rel (%p793) target = $region40
    $region39: #{dual_backbone_inj_forward.2} parent=5 // pred_region
      %s796 = ssub.s32 %s9, 2
      // Predicated region
      $region41: #{dual_backbone_inj_forward.2} parent=39 // pred_check
        %p797 = pneg %p116
      $region42: #{dual_backbone_inj_forward.2} parent=39 // pred_check_branch
        %799 = sbr.rel (%p797) target = $region44
      $region43: #{dual_backbone_inj_forward.2} parent=39 // pred_region
        %p800 = scmp.lt.s32.totalorder %s15, 1
        %s801 = scalar_select %p800, %s15, 1
        %s802 = smul.addr %s801, 6
        %s803 = smul.addr %s802, 4
        %s804 = scalar_lea.vmem %s3, %s803
      $region44: #{dual_backbone_inj_forward.2} parent=39 // pred_fallthru
        _
    $region40: #{dual_backbone_inj_forward.2} parent=5 // pred_fallthru
      _
  $region6: #{dual_backbone_inj_forward.2} parent=0 // loop_footer
    %s13 = sadd.s32 1, %s9
  $region7: #{dual_backbone_inj_forward.2} parent=0 // loop_footer_branch
    %8 = sbr.rel target = $region3
  $region8: #{dual_backbone_inj_forward.2} parent=0 // loop_exit
    _

// kernel: dual_backbone_inj_forward.3
$region0: #{dual_backbone_inj_forward.3}
  #allocation0 [shape = 'u32[]', space=smem, size = 0x4, offset = 0x4, fixed_abs, tag = 'smem constant byte address 0x4 - core index']
  #allocation1 [shape = 'u32[144,128]{1,0:T(1,128)}', space=vmem, size = 0x12000, scoped, tag = 'internal scratch']
  #allocation2 [shape = 'bf16[88,128]{1,0:T(8,128)(2,1)}', space=vmem, size = 0x5800, scoped, tag = 'scratch operand']
  %s0 = inlined_call_operand.vmem [shape: bf16[2,2,32,256], index: 0, kind: input, shape index: {}]
  %s1 = inlined_call_operand.vmem [shape: bf16[2,16,88], index: 1, kind: input, shape index: {}]
  %s2 = inlined_call_operand.vmem [shape: f32[2,16,1], index: 2, kind: input, shape index: {}]
  %s3 = inlined_call_operand.vmem [shape: f32[2,16,128], index: 3, kind: output, shape index: {}]
  %s4 = sld [smem:[#allocation0]]
  $region53: #{dual_backbone_inj_forward.3} parent=0
    _
  %s6 = ssub.s32 1, %s4
  %s7 = scalar_select 0, %s6, %s4
  loop: start=0, step=1, limit=6
  $region2: #{dual_backbone_inj_forward.3} parent=0 // loop_pre_header
    _
  $region3: #{dual_backbone_inj_forward.3} parent=0 // loop_header
    %s9 = sphi 0, %s13
    %p10 = scmp.ge.s32.totalorder %s9, 6
    %s16 = sphi 0, %s28
    %s17 = sphi 0, %s24
    %s18 = sphi 0, %s16
    %s19 = sphi 0, %s17
    %s20 = sphi 0, %s18
    %s21 = sphi 0, %s19
    %s33 = sphi 0, %s35
    %s36 = sphi 0, %s33
    %s37 = sphi 0, %s36
    %s53 = sphi 0, %s37
    %s59 = sphi 0, %s61
    %s62 = sphi 0, %s59
    %s63 = sphi 0, %s62
    %s79 = sphi 0, %s63
    %s85 = sphi 0, %s87
    %s88 = sphi 0, %s85
    %s89 = sphi 0, %s88
    %s105 = sphi 0, %s89
    %s111 = sphi 0, %s113
    %s114 = sphi 0, %s111
    %s115 = sphi 0, %s114
    %s131 = sphi 0, %s115
  $region4: #{dual_backbone_inj_forward.3} parent=0 // loop_header_branch
    %12 = sbr.rel (%p10) target = $region8
  $region5: #{dual_backbone_inj_forward.3} parent=0 // loop_body
    %s14 = ssub.s32 %s9, 1
    %s15 = ssub.s32 %s9, 2
    %s22 = sadd.s32 1, %s17
    %p23 = scmp.ge.s32.totalorder %s22, 2
    %s24 = scalar_select %p23, 0, %s22
    %s25 = sadd.s32 1, %s16
    %s26 = scalar_select %p23, %s25, %s16
    %p27 = scmp.ge.s32.totalorder %s26, 2
    %s28 = scalar_select %p27, 0, %s26
    %s29 = ssub.s32 %s17, %s24
    %s30 = ssub.s32 %s16, %s28
    %s31 = sor.u32 %s29, %s30
    %p32 = scmp.eq.s32.totalorder %s31, 0
    %s34 = sadd.s32 %s33, 1
    %s35 = scalar_select %p32, %s33, %s34
    %p38 = pneg %p32
    %p39 = scmp.eq.s32.totalorder %s9, 3
    %p40 = por %p38, %p39
    %p41 = scmp.ne.s32.totalorder %s33, %s36
    %p42 = scmp.eq.s32.totalorder %s9, 0
    %p43 = por %p41, %p42
    %p44 = scmp.ne.s32.totalorder %s33, %s36
    %p45 = scmp.eq.s32.totalorder %s14, 3
    %p46 = por %p44, %p45
    %p47 = scmp.ne.s32.totalorder %s36, %s37
    %p48 = scmp.eq.s32.totalorder %s14, 0
    %p49 = por %p47, %p48
    %p50 = scmp.ne.s32.totalorder %s36, %s37
    %p51 = scmp.eq.s32.totalorder %s15, 3
    %p52 = por %p50, %p51
    %p54 = scmp.ne.s32.totalorder %s37, %s53
    %p55 = scmp.eq.s32.totalorder %s15, 0
    %p56 = por %p54, %p55
    %s57 = ssub.s32 %s17, %s24
    %p58 = scmp.eq.s32.totalorder %s57, 0
    %s60 = sadd.s32 %s59, 1
    %s61 = scalar_select %p58, %s59, %s60
    %p64 = pneg %p58
    %p65 = scmp.eq.s32.totalorder %s9, 3
    %p66 = por %p64, %p65
    %p67 = scmp.ne.s32.totalorder %s59, %s62
    %p68 = scmp.eq.s32.totalorder %s9, 0
    %p69 = por %p67, %p68
    %p70 = scmp.ne.s32.totalorder %s59, %s62
    %p71 = scmp.eq.s32.totalorder %s14, 3
    %p72 = por %p70, %p71
    %p73 = scmp.ne.s32.totalorder %s62, %s63
    %p74 = scmp.eq.s32.totalorder %s14, 0
    %p75 = por %p73, %p74
    %p76 = scmp.ne.s32.totalorder %s62, %s63
    %p77 = scmp.eq.s32.totalorder %s15, 3
    %p78 = por %p76, %p77
    %p80 = scmp.ne.s32.totalorder %s63, %s79
    %p81 = scmp.eq.s32.totalorder %s15, 0
    %p82 = por %p80, %p81
    %s83 = ssub.s32 %s17, %s24
    %p84 = scmp.eq.s32.totalorder %s83, 0
    %s86 = sadd.s32 %s85, 1
    %s87 = scalar_select %p84, %s85, %s86
    %p90 = pneg %p84
    %p91 = scmp.eq.s32.totalorder %s9, 3
    %p92 = por %p90, %p91
    %p93 = scmp.ne.s32.totalorder %s85, %s88
    %p94 = scmp.eq.s32.totalorder %s9, 0
    %p95 = por %p93, %p94
    %p96 = scmp.ne.s32.totalorder %s85, %s88
    %p97 = scmp.eq.s32.totalorder %s14, 3
    %p98 = por %p96, %p97
    %p99 = scmp.ne.s32.totalorder %s88, %s89
    %p100 = scmp.eq.s32.totalorder %s14, 0
    %p101 = por %p99, %p100
    %p102 = scmp.ne.s32.totalorder %s88, %s89
    %p103 = scmp.eq.s32.totalorder %s15, 3
    %p104 = por %p102, %p103
    %p106 = scmp.ne.s32.totalorder %s89, %s105
    %p107 = scmp.eq.s32.totalorder %s15, 0
    %p108 = por %p106, %p107
    %s109 = ssub.s32 %s16, %s28
    %p110 = scmp.eq.s32.totalorder %s109, 0
    %s112 = sadd.s32 %s111, 1
    %s113 = scalar_select %p110, %s111, %s112
    %p116 = pneg %p110
    %p117 = scmp.eq.s32.totalorder %s9, 3
    %p118 = por %p116, %p117
    %p119 = scmp.ne.s32.totalorder %s111, %s114
    %p120 = scmp.eq.s32.totalorder %s9, 0
    %p121 = por %p119, %p120
    %p122 = scmp.ne.s32.totalorder %s111, %s114
    %p123 = scmp.eq.s32.totalorder %s14, 3
    %p124 = por %p122, %p123
    %p125 = scmp.ne.s32.totalorder %s114, %s115
    %p126 = scmp.eq.s32.totalorder %s14, 0
    %p127 = por %p125, %p126
    %p128 = scmp.ne.s32.totalorder %s114, %s115
    %p129 = scmp.eq.s32.totalorder %s15, 3
    %p130 = por %p128, %p129
    %p132 = scmp.ne.s32.totalorder %s115, %s131
    %p133 = scmp.eq.s32.totalorder %s15, 0
    %p134 = por %p132, %p133
    %p135 = scmp.le.s32.totalorder 1, %s9
    %p136 = scmp.lt.s32.totalorder %s9, 5
    %p137 = pnand %p135, %p136
    %p138 = pneg %p137
    // Predicated region
    $region9: #{dual_backbone_inj_forward.3} parent=5 // pred_check
      _
    $region10: #{dual_backbone_inj_forward.3} parent=5 // pred_check_branch
      %140 = sbr.rel (%p137) target = $region12
    $region11: #{dual_backbone_inj_forward.3} parent=5 // pred_region
      %s141 = ssub.s32 %s9, 1
    $region12: #{dual_backbone_inj_forward.3} parent=5 // pred_fallthru
      _
    %p142 = scmp.lt.s32.totalorder %s9, 4
    // Predicated region
    $region13: #{dual_backbone_inj_forward.3} parent=5 // pred_check
      %p143 = pneg %p142
    $region14: #{dual_backbone_inj_forward.3} parent=5 // pred_check_branch
      %145 = sbr.rel (%p143) target = $region16
    $region15: #{dual_backbone_inj_forward.3} parent=5 // pred_region
      // Predicated region
      $region17: #{dual_backbone_inj_forward.3} parent=15 // pred_check
        %p146 = pneg %p43
      $region18: #{dual_backbone_inj_forward.3} parent=15 // pred_check_branch
        %148 = sbr.rel (%p146) target = $region20
      $region19: #{dual_backbone_inj_forward.3} parent=15 // pred_region
        %p149 = scmp.lt.s32.totalorder %s17, 1
        %s150 = scalar_select %p149, %s17, 1
        %p151 = scmp.lt.s32.totalorder %s16, 1
        %s152 = scalar_select %p151, %s16, 1
        %s153 = smul.addr %s152, 8
        %s154 = smul.addr %s150, 16
        %s155 = sadd.s32 %s153, %s154
        %s156 = smul.addr %s155, 4
        %s157 = scalar_lea.vmem %s0, %s156
      $region20: #{dual_backbone_inj_forward.3} parent=15 // pred_fallthru
        _
      // Predicated region
      $region21: #{dual_backbone_inj_forward.3} parent=15 // pred_check
        %p158 = pneg %p69
      $region22: #{dual_backbone_inj_forward.3} parent=15 // pred_check_branch
        %160 = sbr.rel (%p158) target = $region24
      $region23: #{dual_backbone_inj_forward.3} parent=15 // pred_region
        %p161 = scmp.lt.s32.totalorder %s17, 1
        %s162 = scalar_select %p161, %s17, 1
        %s163 = smul.addr %s162, 2
        %s164 = smul.addr %s163, 4
        %s165 = scalar_lea.vmem %s1, %s164
      $region24: #{dual_backbone_inj_forward.3} parent=15 // pred_fallthru
        _
      // Predicated region
      $region25: #{dual_backbone_inj_forward.3} parent=15 // pred_check
        %p166 = pneg %p95
      $region26: #{dual_backbone_inj_forward.3} parent=15 // pred_check_branch
        %168 = sbr.rel (%p166) target = $region28
      $region27: #{dual_backbone_inj_forward.3} parent=15 // pred_region
        %p169 = scmp.lt.s32.totalorder %s17, 1
        %s170 = scalar_select %p169, %s17, 1
        %s171 = smul.addr %s170, 2
        %s172 = smul.addr %s171, 8
        %s173 = scalar_lea.vmem %s2, %s172
      $region28: #{dual_backbone_inj_forward.3} parent=15 // pred_fallthru
        _
    $region16: #{dual_backbone_inj_forward.3} parent=5 // pred_fallthru
      _
    %p174 = scmp.le.s32.totalorder 1, %s9
    %p175 = scmp.lt.s32.totalorder %s9, 5
    %p176 = pnand %p174, %p175
    %p177 = pneg %p176
    // Predicated region
    $region29: #{dual_backbone_inj_forward.3} parent=5 // pred_check
      _
    $region30: #{dual_backbone_inj_forward.3} parent=5 // pred_check_branch
      %179 = sbr.rel (%p176) target = $region32
    $region31: #{dual_backbone_inj_forward.3} parent=5 // pred_region
      %s180 = ssub.s32 %s9, 1
      %p181 = scmp.lt.s32.totalorder %s19, 1
      %s182 = scalar_select %p181, %s19, 1
      %p183 = scmp.lt.s32.totalorder %s18, 1
      %s184 = scalar_select %p183, %s18, 1
      %s185 = smul.addr %s184, 8
      %s186 = smul.addr %s182, 16
      %s187 = sadd.s32 %s185, %s186
      %s188 = smul.addr %s187, 4
      %s189 = scalar_lea.vmem %s0, %s188
      %p190 = pneg %p49
      %p191 = pneg %p46
      %p192 = scmp.lt.s32.totalorder %s19, 1
      %s193 = scalar_select %p192, %s19, 1
      %s194 = smul.addr %s193, 2
      %s195 = smul.addr %s194, 4
      %s196 = scalar_lea.vmem %s1, %s195
      %p197 = pneg %p75
      %p198 = pneg %p72
      %p199 = scmp.lt.s32.totalorder %s19, 1
      %s200 = scalar_select %p199, %s19, 1
      %s201 = smul.addr %s200, 2
      %s202 = smul.addr %s201, 8
      %s203 = scalar_lea.vmem %s2, %s202
      %p204 = pneg %p101
      %p205 = pneg %p98
      %p206 = pneg %p127
      %p207 = pneg %p124
      %p208 = scmp.lt.s32.totalorder %s18, 1
      %s209 = scalar_select %p208, %s18, 1
      %s210 = smul.addr %s209, 2
      %s211 = smul.addr %s210, 8
      %s212 = scalar_lea.vmem %s3, %s211
      %p213 = scmp.lt.s32.totalorder %s19, 1
      %s214 = scalar_select %p213, %s19, 1
      %p215 = scmp.lt.s32.totalorder %s18, 1
      %s216 = scalar_select %p215, %s18, 1
      %s217 = smul.addr %s216, 8
      %s218 = smul.addr %s214, 16
      %s219 = sadd.s32 %s217, %s218
      %s220 = smul.addr %s219, 4
      %s221 = scalar_lea.vmem %s0, %s220
      %p222 = scmp.lt.s32.totalorder %s19, 1
      %s223 = scalar_select %p222, %s19, 1
      %s224 = smul.addr %s223, 2
      %s225 = smul.addr %s224, 4
      %s226 = scalar_lea.vmem %s1, %s225
      %p227 = scmp.lt.s32.totalorder %s19, 1
      %s228 = scalar_select %p227, %s19, 1
      %s229 = smul.addr %s228, 2
      %s230 = smul.addr %s229, 8
      %s231 = scalar_lea.vmem %s2, %s230
      %p232 = scmp.lt.s32.totalorder %s18, 1
      %s233 = scalar_select %p232, %s18, 1
      %s234 = smul.addr %s233, 2
      %s235 = smul.addr %s234, 8
      %s236 = scalar_lea.vmem %s3, %s235
      %v238 = vld [vmem:[%s221] sm:$0xff]
      %v239 = vld [vmem:[%s221 + $0x8] sm:$0xff]
      %v240 = vld [vmem:[%s221 + $0x10] sm:$0xff]
      %v241 = vld [vmem:[%s221 + $0x18] sm:$0xff]
      %v242 = vld [vmem:[%s226] sm:$0xf]
      %v243 = vld [vmem:[%s226 + $0x4] sm:$0xf]
      %244 = vst [vmem:[#allocation2] sm:$0xf] %v238
      %245 = vst [vmem:[#allocation2 + $0x4] sm:$0xf] %v239
      %247 = vrot.lane.b32.xlu0 %v238, 127
      %v248 = vpop.permute.xlu0 %247
      %v249 = vrot.slane %v248, 4
      %vm250 = vcmask 1039360
      %v251 = vsel %vm250, %v248, %v249
      %253 = vst [vmem:[#allocation2 + $0x8] sm:$0xf] %v251
      %254 = vst [vmem:[#allocation2 + $0xc] sm:$0xf] %v240
      %255 = vst [vmem:[#allocation2 + $0x10] sm:$0xf] %v241
      %257 = vrot.lane.b32.xlu0 %v240, 127
      %v258 = vpop.permute.xlu0 %257
      %v259 = vrot.slane %v258, 4
      %v260 = vsel %vm250, %v258, %v259
      %262 = vst [vmem:[#allocation2 + $0x14] sm:$0xf] %v260
      %263 = vrot.lane.b32.xlu0 %v238, 119
      %v264 = vpop.permute.xlu0 %263
      %v265 = vrot.slane %v264, 4
      %vm266 = vcmask 973824
      %v267 = vsel %vm266, %v264, %v265
      %269 = vst [vmem:[#allocation2 + $0x18] sm:$0xf] %v267
      %271 = vrot.lane.b32.xlu0 %v239, 119
      %v272 = vpop.permute.xlu0 %271
      %v273 = vrot.slane %v272, 4
      %v274 = vsel %vm266, %v272, %v273
      %276 = vst [vmem:[#allocation2 + $0x1c] sm:$0xf] %v274
      %277 = vrot.lane.b32.xlu0 %v238, 118
      %v278 = vpop.permute.xlu0 %277
      %v279 = vrot.slane %v278, 4
      %vm280 = vcmask 965632
      %v281 = vsel %vm280, %v278, %v279
      %283 = vst [vmem:[#allocation2 + $0x20] sm:$0xf] %v281
      %p284 = scmp.eq.s32.totalorder %s19, 0
      // Predicated region
      $region33: #{dual_backbone_inj_forward.3} parent=31 // pred_check
        %p285 = pneg %p284
      $region34: #{dual_backbone_inj_forward.3} parent=31 // pred_check_branch
        %287 = sbr.rel (%p285) target = $region36
      $region35: #{dual_backbone_inj_forward.3} parent=31 // pred_region
        %v288 = vld [vmem:[#allocation2] sm:$0xf]
        %v289 = vld [vmem:[#allocation2 + $0x4] sm:$0xf]
        %v290 = vld [vmem:[#allocation2 + $0x8] sm:$0xf]
        %v291 = vld [vmem:[#allocation2 + $0xc] sm:$0xf]
        %v292 = vld [vmem:[#allocation2 + $0x10] sm:$0xf]
        %v293 = vld [vmem:[#allocation2 + $0x14] sm:$0xf]
        %v294 = vld [vmem:[#allocation2 + $0x18] sm:$0xf]
        %v295 = vld [vmem:[#allocation2 + $0x1c] sm:$0xf]
        %v296 = vld [vmem:[#allocation2 + $0x20] sm:$0xf]
        %v297 = vld [vmem:[%s231] sm:$0xff]
        %v298 = vld [vmem:[%s231 + $0x8] sm:$0xff]
        %300 = vset.pattern.permute.xlu0 0
        %301 = vperm.xlu0 %300, %v297
        %v302 = vpop.permute.xlu0 %301
        %305 = vset.pattern.permute.xlu0 0
        %306 = vperm.xlu0 %305, %v298
        %v307 = vpop.permute.xlu0 %306
        %v311 = vunpack.c.l.b16 %v242
        %v312 = vunpack.c.l.b16 %v243
        %v313 = vpack.c.b16 %v312, %v311
        %v323 = vunpack.c.l.b16 %v288
        %v324 = vunpack.c.l.b16 %v289
        %v325 = vunpack.c.l.b16 %v290
        %v326 = vunpack.c.l.b16 %v291
        %v327 = vunpack.c.l.b16 %v292
        %v328 = vunpack.c.l.b16 %v293
        %v329 = vunpack.c.l.b16 %v294
        %v330 = vunpack.c.l.b16 %v295
        %v331 = vunpack.c.l.b16 %v296
        %v332 = vpack.c.b16 %v324, %v323
        %v333 = vpack.c.b16 %v326, %v325
        %v334 = vpack.c.b16 %v328, %v327
        %v335 = vpack.c.b16 %v330, %v329
        %v336 = vpack.c.b16 %v331, %v331
        %vm341 = vcmask 588800
        %v343 = vsel %vm341, %v313, 0
        %vm345 = vcmask 1043456
        %v347 = vsel %vm345, %v336, 0
        %349 = vmatprep.subr.bf16.mxu0 0
        %350 = vmatpush1.bf16.msra.mxu0 %v332
        %351 = vmatprep.subr.bf16.mxu0 0
        %352 = vmatpush1.bf16.msra.mxu0 %v333
        %353 = vmatprep.subr.bf16.mxu0 0
        %354 = vmatpush1.bf16.msra.mxu0 %v334
        %355 = vmatprep.subr.bf16.mxu0 0
        %356 = vmatpush1.bf16.msra.mxu0 %v335
        %357 = vmatprep.subr.bf16.mxu0 0
        %358 = vmatpush1.bf16.msra.mxu0 %v347
        %359 = vmatprep.subr.bf16.mxu0 0
        %360 = vmatpush1.bf16.msra.mxu0 0
        %361 = vmatprep.subr.bf16.mxu0 0
        %362 = vmatpush1.bf16.msra.mxu0 0
        %363 = vmatprep.subr.bf16.mxu0 0
        %364 = vmatpush1.bf16.msra.mxu0 0
        %365 = vmatprep.subr.bf16.mxu0 0
        %366 = vmatpush1.bf16.msra.mxu0 0
        %367 = vmatprep.subr.bf16.mxu0 0
        %368 = vmatpush1.bf16.msra.mxu0 0
        %369 = vmatprep.subr.bf16.mxu0 0
        %370 = vmatpush1.bf16.msra.mxu0 0
        %371 = vmatprep.subr.bf16.mxu0 0
        %372 = vmatpush1.bf16.msra.mxu0 0
        %373 = vmatprep.subr.bf16.mxu0 0
        %374 = vmatpush1.bf16.msra.mxu0 0
        %375 = vmatprep.subr.bf16.mxu0 0
        %376 = vmatpush1.bf16.msra.mxu0 0
        %377 = vmatprep.subr.bf16.mxu0 0
        %378 = vmatpush1.bf16.msra.mxu0 0
        %379 = vmatprep.subr.bf16.mxu0 0
        %380 = vmatpush1.bf16.msra.mxu0 0
        %381 = vmatprep.mubr.bf16.mxu0 0
        %382 = vmatmul.mubr.bf16.gmra.mrb[0].mxu0 %v343
        %v383 = vpop.f32.mrb[0].mxu0
        %v384 = vadd.f32 %v302, %v383
        %v385 = vpop.f32.mrb[0].mxu0
        %v386 = vpop.f32.mrb[0].mxu0
        %v387 = vadd.f32 %v307, %v386
        %v388 = vpop.f32.mrb[0].mxu0
        %389 = vdwg.mxu0
        %v390 = vmax.f32 %v384, 0.0
        %v391 = vmax.f32 %v387, 0.0
        %v392 = vpack.c.bf16 %v391, %v390
        %v394 = vunpack.c.l.b16 %v392
        %v395 = vunpack.c.h.b16 %v392
        %v396 = vpack.c.b16 %v394, %v394
        %v397 = vpack.c.b16 %v395, %v395
        %400 = vst [vmem:[#allocation2 + $0x24] sm:$0xf] %v396
        %401 = vst [vmem:[#allocation2 + $0x28] sm:$0xf] %v397
      $region36: #{dual_backbone_inj_forward.3} parent=31 // pred_fallthru
        _
      %p402 = scmp.eq.s32.totalorder %s19, 1
      // Predicated region
      $region37: #{dual_backbone_inj_forward.3} parent=31 // pred_check
        %p403 = pneg %p402
      $region38: #{dual_backbone_inj_forward.3} parent=31 // pred_check_branch
        %405 = sbr.rel (%p403) target = $region40
      $region39: #{dual_backbone_inj_forward.3} parent=31 // pred_region
        %v406 = vld [vmem:[#allocation2] sm:$0xf]
        %v407 = vld [vmem:[#allocation2 + $0x4] sm:$0xf]
        %v408 = vld [vmem:[#allocation2 + $0x8] sm:$0xf]
        %v409 = vld [vmem:[#allocation2 + $0xc] sm:$0xf]
        %v410 = vld [vmem:[#allocation2 + $0x10] sm:$0xf]
        %v411 = vld [vmem:[#allocation2 + $0x14] sm:$0xf]
        %v412 = vld [vmem:[#allocation2 + $0x18] sm:$0xf]
        %v413 = vld [vmem:[#allocation2 + $0x1c] sm:$0xf]
        %v414 = vld [vmem:[#allocation2 + $0x20] sm:$0xf]
        %v415 = vld [vmem:[#allocation2 + $0x24] sm:$0xf]
        %v416 = vld [vmem:[#allocation2 + $0x28] sm:$0xf]
        %v417 = vld [vmem:[%s231] sm:$0xff]
        %v418 = vld [vmem:[%s231 + $0x8] sm:$0xff]
        %420 = vset.pattern.permute.xlu0 0
        %421 = vperm.xlu0 %420, %v417
        %v422 = vpop.permute.xlu0 %421
        %425 = vset.pattern.permute.xlu0 0
        %426 = vperm.xlu0 %425, %v418
        %v427 = vpop.permute.xlu0 %426
        %v431 = vunpack.c.l.b16 %v242
        %v432 = vunpack.c.l.b16 %v243
        %v433 = vpack.c.b16 %v432, %v431
        %v445 = vunpack.c.l.b16 %v406
        %v446 = vunpack.c.l.b16 %v407
        %v447 = vunpack.c.l.b16 %v408
        %v448 = vunpack.c.l.b16 %v409
        %v449 = vunpack.c.l.b16 %v410
        %v450 = vunpack.c.l.b16 %v411
        %v451 = vunpack.c.l.b16 %v412
        %v452 = vunpack.c.l.b16 %v413
        %v453 = vunpack.c.l.b16 %v414
        %v454 = vunpack.c.l.b16 %v415
        %v455 = vunpack.c.l.b16 %v416
        %v456 = vpack.c.b16 %v446, %v445
        %v457 = vpack.c.b16 %v448, %v447
        %v458 = vpack.c.b16 %v450, %v449
        %v459 = vpack.c.b16 %v452, %v451
        %v460 = vpack.c.b16 %v454, %v453
        %v461 = vpack.c.b16 %v455, %v455
        %vm467 = vcmask 719872
        %v469 = vsel %vm467, %v433, 0
        %vm471 = vcmask 1043456
        %v473 = vsel %vm471, %v461, 0
        %475 = vmatprep.subr.bf16.mxu0 0
        %476 = vmatpush1.bf16.msra.mxu0 %v456
        %477 = vmatprep.subr.bf16.mxu0 0
        %478 = vmatpush1.bf16.msra.mxu0 %v457
        %479 = vmatprep.subr.bf16.mxu0 0
        %480 = vmatpush1.bf16.msra.mxu0 %v458
        %481 = vmatprep.subr.bf16.mxu0 0
        %482 = vmatpush1.bf16.msra.mxu0 %v459
        %483 = vmatprep.subr.bf16.mxu0 0
        %484 = vmatpush1.bf16.msra.mxu0 %v460
        %485 = vmatprep.subr.bf16.mxu0 0
        %486 = vmatpush1.bf16.msra.mxu0 %v473
        %487 = vmatprep.subr.bf16.mxu0 0
        %488 = vmatpush1.bf16.msra.mxu0 0
        %489 = vmatprep.subr.bf16.mxu0 0
        %490 = vmatpush1.bf16.msra.mxu0 0
        %491 = vmatprep.subr.bf16.mxu0 0
        %492 = vmatpush1.bf16.msra.mxu0 0
        %493 = vmatprep.subr.bf16.mxu0 0
        %494 = vmatpush1.bf16.msra.mxu0 0
        %495 = vmatprep.subr.bf16.mxu0 0
        %496 = vmatpush1.bf16.msra.mxu0 0
        %497 = vmatprep.subr.bf16.mxu0 0
        %498 = vmatpush1.bf16.msra.mxu0 0
        %499 = vmatprep.subr.bf16.mxu0 0
        %500 = vmatpush1.bf16.msra.mxu0 0
        %501 = vmatprep.subr.bf16.mxu0 0
        %502 = vmatpush1.bf16.msra.mxu0 0
        %503 = vmatprep.subr.bf16.mxu0 0
        %504 = vmatpush1.bf16.msra.mxu0 0
        %505 = vmatprep.subr.bf16.mxu0 0
        %506 = vmatpush1.bf16.msra.mxu0 0
        %507 = vmatprep.mubr.bf16.mxu0 0
        %508 = vmatmul.mubr.bf16.gmra.mrb[0].mxu0 %v469
        %v509 = vpop.f32.mrb[0].mxu0
        %v510 = vadd.f32 %v422, %v509
        %v511 = vpop.f32.mrb[0].mxu0
        %v512 = vpop.f32.mrb[0].mxu0
        %v513 = vadd.f32 %v427, %v512
        %v514 = vpop.f32.mrb[0].mxu0
        %515 = vdwg.mxu0
        %v516 = vmax.f32 %v510, 0.0
        %v517 = vmax.f32 %v513, 0.0
        %518 = vst [vmem:[%s236] sm:$0xff] %v516
        %519 = vst [vmem:[%s236 + $0x8] sm:$0xff] %v517
      $region40: #{dual_backbone_inj_forward.3} parent=31 // pred_fallthru
        _
      %p520 = scmp.lt.s32.totalorder %s18, 1
      %s521 = scalar_select %p520, %s18, 1
      %s522 = smul.addr %s521, 2
      %s523 = smul.addr %s522, 8
      %s524 = scalar_lea.vmem %s3, %s523
      // Predicated region
      $region41: #{dual_backbone_inj_forward.3} parent=31 // pred_check
        %p525 = pneg %p124
      $region42: #{dual_backbone_inj_forward.3} parent=31 // pred_check_branch
        %527 = sbr.rel (%p525) target = $region44
      $region43: #{dual_backbone_inj_forward.3} parent=31 // pred_region
        _
      $region44: #{dual_backbone_inj_forward.3} parent=31 // pred_fallthru
        _
    $region32: #{dual_backbone_inj_forward.3} parent=5 // pred_fallthru
      _
    %p528 = scmp.le.s32.totalorder 2, %s9
    // Predicated region
    $region45: #{dual_backbone_inj_forward.3} parent=5 // pred_check
      %p529 = pneg %p528
    $region46: #{dual_backbone_inj_forward.3} parent=5 // pred_check_branch
      %531 = sbr.rel (%p529) target = $region48
    $region47: #{dual_backbone_inj_forward.3} parent=5 // pred_region
      %s532 = ssub.s32 %s9, 2
      // Predicated region
      $region49: #{dual_backbone_inj_forward.3} parent=47 // pred_check
        %p533 = pneg %p130
      $region50: #{dual_backbone_inj_forward.3} parent=47 // pred_check_branch
        %535 = sbr.rel (%p533) target = $region52
      $region51: #{dual_backbone_inj_forward.3} parent=47 // pred_region
        %p536 = scmp.lt.s32.totalorder %s20, 1
        %s537 = scalar_select %p536, %s20, 1
        %s538 = smul.addr %s537, 2
        %s539 = smul.addr %s538, 8
        %s540 = scalar_lea.vmem %s3, %s539
      $region52: #{dual_backbone_inj_forward.3} parent=47 // pred_fallthru
        _
    $region48: #{dual_backbone_inj_forward.3} parent=5 // pred_fallthru
      _
  $region6: #{dual_backbone_inj_forward.3} parent=0 // loop_footer
    %s13 = sadd.s32 1, %s9
  $region7: #{dual_backbone_inj_forward.3} parent=0 // loop_footer_branch
    %8 = sbr.rel target = $region3
  $region8: #{dual_backbone_inj_forward.3} parent=0 // loop_exit
    _

</llo_original>
